<compile_context>
chip_gen: v7x
topology: tpu7x:2x2x1
jax: 0.10.0
libtpu: 0.0.40
codegen_flags: <defaults>
</compile_context>

<pallas_src>
import functools
import math

import jax
import jax.numpy as jnp
from jax import lax
from jax.experimental import pallas as pl
from jax.experimental.pallas import tpu as pltpu


def _patch_proj_kernel(x_ref, w_ref, pos_ref, o_ref, *, tn, pos_rows):
    # x_ref:   (tn, d_in)      bf16   (patch rows, already cast in wrapper)
    # w_ref:   (d_in, d_out)   bf16   (resident)
    # pos_ref: (pos_rows, d_out) f32  (resident; pos_emb + conv bias folded in)
    # o_ref:   (tn, d_out)     f32
    t = pl.program_id(0)
    start = pl.multiple_of(lax.rem(t * tn, pos_rows), 8)
    pos = pos_ref[pl.ds(start, tn), :]
    acc = jnp.dot(x_ref[...], w_ref[...], preferred_element_type=jnp.float32)
    o_ref[...] = (acc + pos).astype(o_ref.dtype)


def _pick_row_tile(rows, n, target=512):
    """Largest row tile <= target that (a) divides rows, (b) is either a divisor
    or a multiple of n (so the pos slice never straddles a batch boundary), and
    (c) is sublane-aligned.  Prefers >= 2 grid steps (v7x has 2 TensorCores)."""
    def valid(t, align):
        return rows % t == 0 and (n % t == 0 or t % n == 0) and t % align == 0

    def best(limit, min_steps):
        for align in (16, 8):                       # 16 preferred for bf16 tiles
            for t in range(min(limit, rows), align - 1, -1):
                if valid(t, align) and rows // t >= min_steps:
                    return t
        return None

    t = best(target, 1)
    if t is not None and rows // t < 2:
        t2 = best(target, 2)                        # give both v7x cores work
        if t2 is not None:
            t = t2
    if t is None:
        t = rows                                    # full-dim block always legal
    return t


def patch_and_pos_emb_pallas(x, conv_w, conv_b, cls_token, pos_emb, patch_size,
                             tile_target=512, mxu_dtype=jnp.bfloat16,
                             out_dtype=jnp.float32):
    """x: (B, C, H, W). Returns (B, num_patches + 1, dim) in out_dtype.

    out_dtype=jnp.bfloat16 can be used on v7x if downstream accepts bf16 tokens
    (removes ~1/3 of remaining HBM bytes); default f32 matches the module."""
    B, C, H, W = x.shape
    ph, pw = H // patch_size[0], W // patch_size[1]
    n = ph * pw
    d_in = C * patch_size[0] * patch_size[1]
    d_out = conv_w.shape[0]
    assert d_in == d_out, "module requires C*ps*ps == conv out-channels (768)"

    # Patch extraction in (c, kh, kw) order == Conv2d contraction order.
    # bf16 cast is fused into the materializing transpose; batch flattened into rows.
    rows = B * n
    patches = x.reshape(B, C, ph, patch_size[0], pw, patch_size[1])
    patches = patches.transpose(0, 2, 4, 1, 3, 5).astype(mxu_dtype)
    patches = patches.reshape(rows, d_in)

    # (d_in, d_out) = flattened conv weight transposed; bf16 MXU operands.
    w_mat = conv_w.reshape(d_out, d_in).T.astype(mxu_dtype)
    pos_t = pos_emb[0].T.astype(jnp.float32)                 # (n + 1, d_out)
    pos_patch = pos_t[1:] + conv_b.reshape(1, d_out).astype(jnp.float32)  # bias folded in

    tn = _pick_row_tile(rows, n, tile_target)
    if tn > n:                       # each tile spans tn//n whole images -> tile pos
        pos_res = jnp.tile(pos_patch, (tn // n, 1))
    else:                            # each tile sits inside one image -> slice pos
        pos_res = pos_patch
    pos_rows = pos_res.shape[0]
    grid = (rows // tn,)

    # Pipeline footprint (x/out double-buffered, weight + pos resident) + headroom.
    est_vmem = (2 * tn * d_in * 2 + 2 * tn * d_out * 4
                + 2 * d_in * d_out * 2 + 2 * pos_rows * d_out * 4)
    vmem_limit = int(min(64 * 2**20, max(32 * 2**20, 2 * est_vmem)))

    flops = 2 * rows * d_in * d_out
    bytes_accessed = (rows * d_in * 2 + d_in * d_out * 2
                      + pos_rows * d_out * 4 + rows * d_out * jnp.dtype(out_dtype).itemsize)

    kernel = functools.partial(_patch_proj_kernel, tn=tn, pos_rows=pos_rows)

    patch_tokens = pl.pallas_call(
        kernel,
        out_shape=jax.ShapeDtypeStruct((rows, d_out), out_dtype),
        grid=grid,
        in_specs=[
            pl.BlockSpec((tn, d_in), lambda t: (t, 0)),        # patch rows (bf16)
            pl.BlockSpec((d_in, d_out), lambda t: (0, 0)),     # weight (resident)
            pl.BlockSpec((pos_rows, d_out), lambda t: (0, 0)), # pos+bias (resident)
        ],
        out_specs=pl.BlockSpec((tn, d_out), lambda t: (t, 0)),
        compiler_params=pltpu.CompilerParams(
            dimension_semantics=("parallel",),
            vmem_limit_bytes=vmem_limit),
        cost_estimate=pl.CostEstimate(
            flops=flops, transcendentals=0, bytes_accessed=int(bytes_accessed)),
    )(patches, w_mat, pos_res)

    patch_tokens = patch_tokens.reshape(B, n, d_out)

    # cls token row (one per batch): trivial broadcast add, kept outside the kernel.
    cls_row = (cls_token[0, :, 0] + pos_t[0]).reshape(1, 1, d_out)
    cls_row = jnp.broadcast_to(cls_row, (B, 1, d_out)).astype(out_dtype)
    return jnp.concatenate([cls_row, patch_tokens], axis=1)


def patch_and_pos_emb_ref(x, conv_w, conv_b, cls_token, pos_emb, patch_size):
    """Pure-JAX reference that mirrors the PyTorch forward (conv path)."""
    tokens = lax.conv_general_dilated(
        x, conv_w, window_strides=patch_size, padding="VALID",
        dimension_numbers=("NCHW", "OIHW", "NCHW"),
        precision=lax.Precision.HIGHEST)
    tokens = tokens + conv_b.reshape(1, -1, 1, 1)
    b = x.shape[0]
    n = tokens.shape[2] * tokens.shape[3]
    tokens = tokens.reshape(b, tokens.shape[1], n)
    cls = jnp.broadcast_to(cls_token, (b, cls_token.shape[1], 1))
    tokens = jnp.concatenate([cls, tokens], axis=2)
    tokens = tokens + pos_emb
    return jnp.transpose(tokens, (0, 2, 1))


if __name__ == "__main__":
    # Small shapes consistent with the module (conv is hard-coded 3 -> 768, 16x16/16):
    # batch=2, channels=3, 64x64 image -> 4x4 = 16 patch tokens, dim = 768.
    B, C = 2, 3
    PS = (16, 16)
    H = W = 64
    D = 768                    # conv out-channels == C * 16 * 16
    n_patches = (H // PS[0]) * (W // PS[1])

    key = jax.random.PRNGKey(0)
    kx, kw, kb, kc, kp = jax.random.split(key, 5)

    x = jax.random.normal(kx, (B, C, H, W), jnp.float32)
    fan_in = C * PS[0] * PS[1]
    bound = 1.0 / math.sqrt(fan_in)
    conv_w = jax.random.uniform(kw, (D, C, PS[0], PS[1]), jnp.float32, -bound, bound)
    conv_b = jax.random.uniform(kb, (D,), jnp.float32, -bound, bound)
    cls_token = jax.random.normal(kc, (1, D, 1), jnp.float32)             # torch.randn
    pos_emb = jax.random.uniform(kp, (1, D, n_patches + 1), jnp.float32)  # torch.rand

    out = patch_and_pos_emb_pallas(x, conv_w, conv_b, cls_token, pos_emb, PS)
    out = jax.block_until_ready(out)

    ref = patch_and_pos_emb_ref(x, conv_w, conv_b, cls_token, pos_emb, PS)
    assert out.shape == (B, n_patches + 1, D), out.shape
    max_err = float(jnp.max(jnp.abs(out - ref)))
    # bf16 MXU operands (K=768) vs f32 HIGHEST conv reference -> loose tolerance.
    assert max_err < 5e-2, max_err
    print("KERNEL_OK")
</pallas_src>

<mosaic_0001>
module attributes {stable_mosaic.version = 11 : i64} {
  func.func @_patch_proj_kernel(%arg0: i32, %arg1: memref<16x768xbf16, #tpu.memory_space<vmem>>, %arg2: memref<768x768xbf16, #tpu.memory_space<vmem>>, %arg3: memref<16x768xf32, #tpu.memory_space<vmem>>, %arg4: memref<16x768xf32, #tpu.memory_space<vmem>>) attributes {dimension_semantics = [#tpu.dimension_semantics<parallel>], iteration_bounds = array<i64: 2>, scalar_prefetch = 0 : i64, scratch_operands = 0 : i64, tpu.core_type = #tpu.core_type<tc>, window_params = [{transform_indices = @transform_0, window_bounds = array<i64: 16, 768>}, {pipeline_mode = #tpu.pipeline_mode<synchronous>, transform_indices = @transform_1, window_bounds = array<i64: 768, 768>}, {pipeline_mode = #tpu.pipeline_mode<synchronous>, transform_indices = @transform_2, window_bounds = array<i64: 16, 768>}, {transform_indices = @transform_3, window_bounds = array<i64: 16, 768>}]} {
    %c16_i32 = arith.constant 16 : i32
    %0 = arith.muli %arg0, %c16_i32 : i32
    %c16_i32_0 = arith.constant 16 : i32
    %1 = arith.remsi %0, %c16_i32_0 : i32
    %2 = tpu.assume_multiple %1, 8 : i32
    %3 = arith.index_cast %2 : i32 to index
    %c0 = arith.constant 0 : index
    %4 = vector.load %arg3[%3, %c0] : memref<16x768xf32, #tpu.memory_space<vmem>>, vector<16x768xf32>
    %c0_1 = arith.constant 0 : index
    %c0_2 = arith.constant 0 : index
    %5 = vector.load %arg1[%c0_1, %c0_2] : memref<16x768xbf16, #tpu.memory_space<vmem>>, vector<16x768xbf16>
    %c0_3 = arith.constant 0 : index
    %c0_4 = arith.constant 0 : index
    %6 = vector.load %arg2[%c0_3, %c0_4] : memref<768x768xbf16, #tpu.memory_space<vmem>>, vector<768x768xbf16>
    %cst = arith.constant dense<0.000000e+00> : vector<16x768xf32>
    %7 = tpu.matmul %5, %6, %cst {dimension_numbers = #tpu.dot_dimension_numbers<[1], [0], [0], [1], [0, 0, 1, 1], [], []>} : vector<16x768xbf16>, vector<768x768xbf16>, vector<16x768xf32> -> vector<16x768xf32>
    %8 = arith.addf %7, %4 : vector<16x768xf32>
    %c0_5 = arith.constant 0 : index
    %c0_6 = arith.constant 0 : index
    %9 = vector.load %arg4[%c0_5, %c0_6] : memref<16x768xf32, #tpu.memory_space<vmem>>, vector<16x768xf32>
    tpu.vector_store %arg4[%c0_5, %c0_6], %8 {strides = array<i32>} : memref<16x768xf32, #tpu.memory_space<vmem>>, vector<16x768xf32>,
    return
  }
  func.func @transform_0(%arg0: i32) -> (i32, i32) {
    %c0_i32 = arith.constant 0 : i32
    %c0_i32_0 = arith.constant 0 : i32
    return %arg0, %c0_i32 : i32, i32
  }
  func.func @transform_1(%arg0: i32) -> (i32, i32) {
    %c0_i32 = arith.constant 0 : i32
    %c0_i32_0 = arith.constant 0 : i32
    %c0_i32_1 = arith.constant 0 : i32
    return %c0_i32, %c0_i32_0 : i32, i32
  }
  func.func @transform_2(%arg0: i32) -> (i32, i32) {
    %c0_i32 = arith.constant 0 : i32
    %c0_i32_0 = arith.constant 0 : i32
    %c0_i32_1 = arith.constant 0 : i32
    return %c0_i32, %c0_i32_0 : i32, i32
  }
  func.func @transform_3(%arg0: i32) -> (i32, i32) {
    %c0_i32 = arith.constant 0 : i32
    %c0_i32_0 = arith.constant 0 : i32
    return %arg0, %c0_i32 : i32, i32
  }
}

</mosaic_0001>

<llo_original>
// kernel: tpu_custom_call.1
$region0: #{tpu_custom_call.1}
  #allocation0 [shape = 'u32[]', space=smem, size = 0x4, offset = 0x4, fixed_abs, tag = 'smem constant byte address 0x4 - core index']
  #allocation1 [shape = 'u32[144,128]{1,0:T(1,128)}', space=vmem, size = 0x12000, scoped, tag = 'internal scratch']
  %s0 = inlined_call_operand.hbm [shape: bf16[32,768], index: 0, kind: input, shape index: {}]
  %s1 = inlined_call_operand.hbm [shape: bf16[768,768], index: 1, kind: input, shape index: {}]
  %s2 = inlined_call_operand.hbm [shape: f32[16,768], index: 2, kind: input, shape index: {}]
  %s3 = inlined_call_operand.hbm [shape: f32[32,768], index: 3, kind: output, shape index: {}]
  %s4 = sld [smem:[#allocation0]]
  $region57: #{tpu_custom_call.1} parent=0
    _
  %s6 = ssub.s32 1, %s4
  %s7 = scalar_select 0, %s6, %s4
  $region1: #{tpu_custom_call.1} parent=0
    #allocation2 [shape = 'u8[49152]{0}', space=vmem, size = 0xc000, scoped, tag = 'input window, operand 0']
    #allocation3 [shape = 's32[2]{0}', space=sflag, size = 0x8, scoped, tag = 'scoped memory for tpu_custom_call.1']
    #allocation4 [shape = 's32[2]{0}', space=sflag, size = 0x8, scoped, tag = 'scoped memory for tpu_custom_call.1']
    #allocation5 [shape = 'u8[1179648]{0}', space=vmem, size = 0x120000, scoped, tag = 'input window, operand 1, single buffered']
    #allocation6 [shape = 's32[1]{0}', space=sflag, size = 0x4, scoped, tag = 'scoped memory for tpu_custom_call.1']
    #allocation7 [shape = 'u8[49152]{0}', space=vmem, size = 0xc000, scoped, tag = 'input window, operand 2, single buffered']
    #allocation8 [shape = 'u8[98304]{0}', space=vmem, size = 0x18000, scoped, tag = 'output window, operand 0']
    %8 = vsyncpa [#allocation3], 0
    %s9 = scalar_lea.sflag [#allocation3], 1
    %10 = vsyncpa %s9, 0
    %11 = vsyncpa [#allocation6], 0
    %12 = vsyncpa [#allocation4], 0
    %s13 = scalar_lea.sflag [#allocation4], 1
    %14 = vsyncpa %s13, 0
    loop: start=0, step=1, limit=4
    $region2: #{tpu_custom_call.1} parent=1 // loop_pre_header
      _
    $region3: #{tpu_custom_call.1} parent=1 // loop_header
      %s16 = sphi 0, %s20
      %p17 = scmp.ge.s32.totalorder %s16, 4
      %s26 = sphi 0, %s28
      %s29 = sphi 0, %s26
      %s30 = sphi 0, %s29
      %s46 = sphi 0, %s30
      %s50 = sphi 0, %s50
      %s52 = sphi 0, %s50
      %s53 = sphi 0, %s52
      %s67 = sphi 0, %s53
      %s71 = sphi 0, %s71
      %s73 = sphi 0, %s71
      %s74 = sphi 0, %s73
      %s88 = sphi 0, %s74
      %s94 = sphi 0, %s96
      %s97 = sphi 0, %s94
      %s98 = sphi 0, %s97
      %s114 = sphi 0, %s98
    $region4: #{tpu_custom_call.1} parent=1 // loop_header_branch
      %19 = sbr.rel (%p17) target = $region8
    $region5: #{tpu_custom_call.1} parent=1 // loop_body
      %s21 = ssub.s32 %s16, 1
      %s22 = ssub.s32 %s16, 2
      %s23 = sadd.s32 %s16, 1
      %s24 = ssub.s32 %s16, %s23
      %p25 = scmp.eq.s32.totalorder %s24, 0
      %s27 = sadd.s32 %s26, 1
      %s28 = scalar_select %p25, %s26, %s27
      %p31 = pneg %p25
      %p32 = scmp.eq.s32.totalorder %s16, 1
      %p33 = por %p31, %p32
      %p34 = scmp.ne.s32.totalorder %s26, %s29
      %p35 = scmp.eq.s32.totalorder %s16, 0
      %p36 = por %p34, %p35
      %p37 = scmp.ne.s32.totalorder %s26, %s29
      %p38 = scmp.eq.s32.totalorder %s21, 1
      %p39 = por %p37, %p38
      %p40 = scmp.ne.s32.totalorder %s29, %s30
      %p41 = scmp.eq.s32.totalorder %s21, 0
      %p42 = por %p40, %p41
      %p43 = scmp.ne.s32.totalorder %s29, %s30
      %p44 = scmp.eq.s32.totalorder %s22, 1
      %p45 = por %p43, %p44
      %p47 = scmp.ne.s32.totalorder %s30, %s46
      %p48 = scmp.eq.s32.totalorder %s22, 0
      %p49 = por %p47, %p48
      %s51 = sadd.s32 %s50, 1
      %p54 = scmp.eq.s32.totalorder %s16, 1
      %p55 = scmp.ne.s32.totalorder %s50, %s52
      %p56 = scmp.eq.s32.totalorder %s16, 0
      %p57 = por %p55, %p56
      %p58 = scmp.ne.s32.totalorder %s50, %s52
      %p59 = scmp.eq.s32.totalorder %s21, 1
      %p60 = por %p58, %p59
      %p61 = scmp.ne.s32.totalorder %s52, %s53
      %p62 = scmp.eq.s32.totalorder %s21, 0
      %p63 = por %p61, %p62
      %p64 = scmp.ne.s32.totalorder %s52, %s53
      %p65 = scmp.eq.s32.totalorder %s22, 1
      %p66 = por %p64, %p65
      %p68 = scmp.ne.s32.totalorder %s53, %s67
      %p69 = scmp.eq.s32.totalorder %s22, 0
      %p70 = por %p68, %p69
      %s72 = sadd.s32 %s71, 1
      %p75 = scmp.eq.s32.totalorder %s16, 1
      %p76 = scmp.ne.s32.totalorder %s71, %s73
      %p77 = scmp.eq.s32.totalorder %s16, 0
      %p78 = por %p76, %p77
      %p79 = scmp.ne.s32.totalorder %s71, %s73
      %p80 = scmp.eq.s32.totalorder %s21, 1
      %p81 = por %p79, %p80
      %p82 = scmp.ne.s32.totalorder %s73, %s74
      %p83 = scmp.eq.s32.totalorder %s21, 0
      %p84 = por %p82, %p83
      %p85 = scmp.ne.s32.totalorder %s73, %s74
      %p86 = scmp.eq.s32.totalorder %s22, 1
      %p87 = por %p85, %p86
      %p89 = scmp.ne.s32.totalorder %s74, %s88
      %p90 = scmp.eq.s32.totalorder %s22, 0
      %p91 = por %p89, %p90
      %s92 = ssub.s32 %s16, %s23
      %p93 = scmp.eq.s32.totalorder %s92, 0
      %s95 = sadd.s32 %s94, 1
      %s96 = scalar_select %p93, %s94, %s95
      %p99 = pneg %p93
      %p100 = scmp.eq.s32.totalorder %s16, 1
      %p101 = por %p99, %p100
      %p102 = scmp.ne.s32.totalorder %s94, %s97
      %p103 = scmp.eq.s32.totalorder %s16, 0
      %p104 = por %p102, %p103
      %p105 = scmp.ne.s32.totalorder %s94, %s97
      %p106 = scmp.eq.s32.totalorder %s21, 1
      %p107 = por %p105, %p106
      %p108 = scmp.ne.s32.totalorder %s97, %s98
      %p109 = scmp.eq.s32.totalorder %s21, 0
      %p110 = por %p108, %p109
      %p111 = scmp.ne.s32.totalorder %s97, %s98
      %p112 = scmp.eq.s32.totalorder %s22, 1
      %p113 = por %p111, %p112
      %p115 = scmp.ne.s32.totalorder %s98, %s114
      %p116 = scmp.eq.s32.totalorder %s22, 0
      %p117 = por %p115, %p116
      %p118 = scmp.le.s32.totalorder 1, %s16
      %p119 = scmp.lt.s32.totalorder %s16, 3
      %p120 = pnand %p118, %p119
      %p121 = pneg %p120
      // Predicated region
      $region9: #{tpu_custom_call.1} parent=5 // pred_check
        _
      $region10: #{tpu_custom_call.1} parent=5 // pred_check_branch
        %123 = sbr.rel (%p120) target = $region12
      $region11: #{tpu_custom_call.1} parent=5 // pred_region
        %s124 = ssub.s32 %s16, 1
        // Predicated region
        $region13: #{tpu_custom_call.1} parent=11 // pred_check
          %p125 = pneg %p63
        $region14: #{tpu_custom_call.1} parent=11 // pred_check_branch
          %127 = sbr.rel (%p125) target = $region16
        $region15: #{tpu_custom_call.1} parent=11 // pred_region
          %s129 = ssub.s32 36864, 36864
          %130 = vsyncadd [#allocation6], %s129
          %s131 = sshll.u32 [#allocation5], 4
          %s132 = int_to_ptr.vmem [resolvable:$true] %s131
          %137 = dma.hbm_to_vmem [thread:$0]  %s1, 36864, %s132, [#allocation6], 384, 384, 24
        $region16: #{tpu_custom_call.1} parent=11 // pred_fallthru
          _
        // Predicated region
        $region17: #{tpu_custom_call.1} parent=11 // pred_check
          %p138 = pneg %p84
        $region18: #{tpu_custom_call.1} parent=11 // pred_check_branch
          %140 = sbr.rel (%p138) target = $region20
        $region19: #{tpu_custom_call.1} parent=11 // pred_region
          %s142 = ssub.s32 1536, 1536
          %143 = vsyncadd [#allocation6], %s142
          %s144 = sshll.u32 [#allocation7], 4
          %s145 = int_to_ptr.vmem [resolvable:$true] %s144
          %150 = dma.hbm_to_vmem [thread:$0]  %s2, 1536, %s145, [#allocation6], 768, 768, 48
        $region20: #{tpu_custom_call.1} parent=11 // pred_fallthru
          _
      $region12: #{tpu_custom_call.1} parent=5 // pred_fallthru
        _
      %p151 = scmp.lt.s32.totalorder %s16, 2
      // Predicated region
      $region21: #{tpu_custom_call.1} parent=5 // pred_check
        %p152 = pneg %p151
      $region22: #{tpu_custom_call.1} parent=5 // pred_check_branch
        %154 = sbr.rel (%p152) target = $region24
      $region23: #{tpu_custom_call.1} parent=5 // pred_region
        // Predicated region
        $region25: #{tpu_custom_call.1} parent=23 // pred_check
          %p155 = pneg %p36
        $region26: #{tpu_custom_call.1} parent=23 // pred_check_branch
          %157 = sbr.rel (%p155) target = $region28
        $region27: #{tpu_custom_call.1} parent=23 // pred_region
          %s158 = sand.u32 %s26, 1
          %s159 = scalar_lea.sflag [#allocation3], %s158
          %s160 = sand.u32 %s26, 1
          %s161 = smul.addr %s160, 48
          %s162 = scalar_lea.vmem [#allocation2], %s161
          %s163 = smul.u32 2, %s16
          %s165 = ssub.s32 768, 768
          %166 = vsyncadd %s159, %s165
          %s167 = smul.addr %s163, 6
          %s168 = smul.addr %s167, 64
          %s169 = scalar_lea.hbm %s0, %s168
          %s170 = sshll.u32 %s162, 4
          %s171 = int_to_ptr.vmem [resolvable:$true] %s170
          %176 = dma.hbm_to_vmem [thread:$0]  %s169, 768, %s171, %s159, 384, 384, 24
        $region28: #{tpu_custom_call.1} parent=23 // pred_fallthru
          _
      $region24: #{tpu_custom_call.1} parent=5 // pred_fallthru
        _
      %p177 = scmp.le.s32.totalorder 1, %s16
      %p178 = scmp.lt.s32.totalorder %s16, 3
      %p179 = pnand %p177, %p178
      %p180 = pneg %p179
      // Predicated region
      $region29: #{tpu_custom_call.1} parent=5 // pred_check
        _
      $region30: #{tpu_custom_call.1} parent=5 // pred_check_branch
        %182 = sbr.rel (%p179) target = $region32
      $region31: #{tpu_custom_call.1} parent=5 // pred_region
        %s183 = ssub.s32 %s16, 1
        %s184 = sand.u32 %s29, 1
        %s185 = scalar_lea.sflag [#allocation3], %s184
        %s186 = sand.u32 %s29, 1
        %s187 = smul.addr %s186, 48
        %s188 = scalar_lea.vmem [#allocation2], %s187
        // Predicated region
        $region33: #{tpu_custom_call.1} parent=31 // pred_check
          %p189 = pneg %p42
        $region34: #{tpu_custom_call.1} parent=31 // pred_check_branch
          %191 = sbr.rel (%p189) target = $region36
        $region35: #{tpu_custom_call.1} parent=31 // pred_region
          %192 = dma.done %s185, 768
        $region36: #{tpu_custom_call.1} parent=31 // pred_fallthru
          _
        // Predicated region
        $region37: #{tpu_custom_call.1} parent=31 // pred_check
          %p193 = pneg %p63
        $region38: #{tpu_custom_call.1} parent=31 // pred_check_branch
          %195 = sbr.rel (%p193) target = $region40
        $region39: #{tpu_custom_call.1} parent=31 // pred_region
          %196 = dma.done [#allocation6], 36864
        $region40: #{tpu_custom_call.1} parent=31 // pred_fallthru
          _
        // Predicated region
        $region41: #{tpu_custom_call.1} parent=31 // pred_check
          %p197 = pneg %p84
        $region42: #{tpu_custom_call.1} parent=31 // pred_check_branch
          %199 = sbr.rel (%p197) target = $region44
        $region43: #{tpu_custom_call.1} parent=31 // pred_region
          %200 = dma.done [#allocation6], 1536
        $region44: #{tpu_custom_call.1} parent=31 // pred_fallthru
          _
        %s201 = sand.u32 %s29, 1
        %s202 = scalar_lea.sflag [#allocation3], %s201
        %s203 = sand.u32 %s29, 1
        %s204 = smul.addr %s203, 48
        %s205 = scalar_lea.vmem [#allocation2], %s204
        %p206 = pneg %p42
        %p207 = pneg %p39
        %p208 = pneg %p63
        %p209 = pneg %p60
        %p210 = pneg %p84
        %p211 = pneg %p81
        %p212 = pneg %p110
        %p213 = pneg %p107
        %s214 = sand.u32 %s97, 1
        %s215 = scalar_lea.sflag [#allocation4], %s214
        %s216 = sand.u32 %s97, 1
        %s217 = smul.addr %s216, 96
        %s218 = scalar_lea.vmem [#allocation8], %s217
        %s219 = smul.u32 2, %s21
        %s220 = smul.u32 2, %s21
        %s221 = smul.u32 %s21, 16
        %p222 = scmp.lt.s32.totalorder %s221, 0
        %s223 = ssub.s32 0, %s221
        %s224 = scalar_select %p222, %s223, %s221
        %s225 = sand.u32 %s224, 15
        %s226 = ssub.s32 0, %s225
        %s227 = scalar_select %p222, %s226, %s225
        %s228 = sshra.s32 %s227, 3
        %s229 = sand.u32 %s227, 7
        %s230 = smul.u32 %s228, 6
        %s231 = smul.addr %s230, 8
        %s232 = scalar_lea.vmem [#allocation7], %s231
        %v233 = vld [vmem:[%s232] sm:$0xff]
        %v234 = vld [vmem:[%s232 + $0x8] sm:$0xff]
        %v235 = vld [vmem:[%s232 + $0x10] sm:$0xff]
        %v236 = vld [vmem:[%s232 + $0x18] sm:$0xff]
        %v237 = vld [vmem:[%s232 + $0x20] sm:$0xff]
        %v238 = vld [vmem:[%s232 + $0x28] sm:$0xff]
        %v239 = vld [vmem:[%s232 + $0x30] sm:$0xff]
        %v240 = vld [vmem:[%s232 + $0x38] sm:$0xff]
        %v241 = vld [vmem:[%s232 + $0x40] sm:$0xff]
        %v242 = vld [vmem:[%s232 + $0x48] sm:$0xff]
        %v243 = vld [vmem:[%s232 + $0x50] sm:$0xff]
        %v244 = vld [vmem:[%s232 + $0x58] sm:$0xff]
        %v245 = vld [vmem:[%s188] sm:$0xff]
        %v246 = vld [vmem:[%s188 + $0x8] sm:$0xff]
        %v247 = vld [vmem:[%s188 + $0x10] sm:$0xff]
        %v248 = vld [vmem:[%s188 + $0x18] sm:$0xff]
        %v249 = vld [vmem:[%s188 + $0x20] sm:$0xff]
        %v250 = vld [vmem:[%s188 + $0x28] sm:$0xff]
        %v251 = vld [vmem:[#allocation5] sm:$0xff]
        %v252 = vld [vmem:[#allocation5 + $0x8] sm:$0xff]
        %v253 = vld [vmem:[#allocation5 + $0x10] sm:$0xff]
        %v254 = vld [vmem:[#allocation5 + $0x18] sm:$0xff]
        %v255 = vld [vmem:[#allocation5 + $0x20] sm:$0xff]
        %v256 = vld [vmem:[#allocation5 + $0x28] sm:$0xff]
        %v257 = vld [vmem:[#allocation5 + $0x30] sm:$0xff]
        %v258 = vld [vmem:[#allocation5 + $0x38] sm:$0xff]
        %v259 = vld [vmem:[#allocation5 + $0x40] sm:$0xff]
        %v260 = vld [vmem:[#allocation5 + $0x48] sm:$0xff]
        %v261 = vld [vmem:[#allocation5 + $0x50] sm:$0xff]
        %v262 = vld [vmem:[#allocation5 + $0x58] sm:$0xff]
        %v263 = vld [vmem:[#allocation5 + $0x60] sm:$0xff]
        %v264 = vld [vmem:[#allocation5 + $0x68] sm:$0xff]
        %v265 = vld [vmem:[#allocation5 + $0x70] sm:$0xff]
        %v266 = vld [vmem:[#allocation5 + $0x78] sm:$0xff]
        %v267 = vld [vmem:[#allocation5 + $0x80] sm:$0xff]
        %v268 = vld [vmem:[#allocation5 + $0x88] sm:$0xff]
        %v269 = vld [vmem:[#allocation5 + $0x90] sm:$0xff]
        %v270 = vld [vmem:[#allocation5 + $0x98] sm:$0xff]
        %v271 = vld [vmem:[#allocation5 + $0xa0] sm:$0xff]
        %v272 = vld [vmem:[#allocation5 + $0xa8] sm:$0xff]
        %v273 = vld [vmem:[#allocation5 + $0xb0] sm:$0xff]
        %v274 = vld [vmem:[#allocation5 + $0xb8] sm:$0xff]
        %v275 = vld [vmem:[#allocation5 + $0xc0] sm:$0xff]
        %v276 = vld [vmem:[#allocation5 + $0xc8] sm:$0xff]
        %v277 = vld [vmem:[#allocation5 + $0xd0] sm:$0xff]
        %v278 = vld [vmem:[#allocation5 + $0xd8] sm:$0xff]
        %v279 = vld [vmem:[#allocation5 + $0xe0] sm:$0xff]
        %v280 = vld [vmem:[#allocation5 + $0xe8] sm:$0xff]
        %v281 = vld [vmem:[#allocation5 + $0xf0] sm:$0xff]
        %v282 = vld [vmem:[#allocation5 + $0xf8] sm:$0xff]
        %v283 = vld [vmem:[#allocation5 + $0x100] sm:$0xff]
        %v284 = vld [vmem:[#allocation5 + $0x108] sm:$0xff]
        %v285 = vld [vmem:[#allocation5 + $0x110] sm:$0xff]
        %v286 = vld [vmem:[#allocation5 + $0x118] sm:$0xff]
        %v287 = vld [vmem:[#allocation5 + $0x120] sm:$0xff]
        %v288 = vld [vmem:[#allocation5 + $0x128] sm:$0xff]
        %v289 = vld [vmem:[#allocation5 + $0x130] sm:$0xff]
        %v290 = vld [vmem:[#allocation5 + $0x138] sm:$0xff]
        %v291 = vld [vmem:[#allocation5 + $0x140] sm:$0xff]
        %v292 = vld [vmem:[#allocation5 + $0x148] sm:$0xff]
        %v293 = vld [vmem:[#allocation5 + $0x150] sm:$0xff]
        %v294 = vld [vmem:[#allocation5 + $0x158] sm:$0xff]
        %v295 = vld [vmem:[#allocation5 + $0x160] sm:$0xff]
        %v296 = vld [vmem:[#allocation5 + $0x168] sm:$0xff]
        %v297 = vld [vmem:[#allocation5 + $0x170] sm:$0xff]
        %v298 = vld [vmem:[#allocation5 + $0x178] sm:$0xff]
        %v299 = vld [vmem:[#allocation5 + $0x180] sm:$0xff]
        %v300 = vld [vmem:[#allocation5 + $0x188] sm:$0xff]
        %v301 = vld [vmem:[#allocation5 + $0x190] sm:$0xff]
        %v302 = vld [vmem:[#allocation5 + $0x198] sm:$0xff]
        %v303 = vld [vmem:[#allocation5 + $0x1a0] sm:$0xff]
        %v304 = vld [vmem:[#allocation5 + $0x1a8] sm:$0xff]
        %v305 = vld [vmem:[#allocation5 + $0x1b0] sm:$0xff]
        %v306 = vld [vmem:[#allocation5 + $0x1b8] sm:$0xff]
        %v307 = vld [vmem:[#allocation5 + $0x1c0] sm:$0xff]
        %v308 = vld [vmem:[#allocation5 + $0x1c8] sm:$0xff]
        %v309 = vld [vmem:[#allocation5 + $0x1d0] sm:$0xff]
        %v310 = vld [vmem:[#allocation5 + $0x1d8] sm:$0xff]
        %v311 = vld [vmem:[#allocation5 + $0x1e0] sm:$0xff]
        %v312 = vld [vmem:[#allocation5 + $0x1e8] sm:$0xff]
        %v313 = vld [vmem:[#allocation5 + $0x1f0] sm:$0xff]
        %v314 = vld [vmem:[#allocation5 + $0x1f8] sm:$0xff]
        %v315 = vld [vmem:[#allocation5 + $0x200] sm:$0xff]
        %v316 = vld [vmem:[#allocation5 + $0x208] sm:$0xff]
        %v317 = vld [vmem:[#allocation5 + $0x210] sm:$0xff]
        %v318 = vld [vmem:[#allocation5 + $0x218] sm:$0xff]
        %v319 = vld [vmem:[#allocation5 + $0x220] sm:$0xff]
        %v320 = vld [vmem:[#allocation5 + $0x228] sm:$0xff]
        %v321 = vld [vmem:[#allocation5 + $0x230] sm:$0xff]
        %v322 = vld [vmem:[#allocation5 + $0x238] sm:$0xff]
        %v323 = vld [vmem:[#allocation5 + $0x240] sm:$0xff]
        %v324 = vld [vmem:[#allocation5 + $0x248] sm:$0xff]
        %v325 = vld [vmem:[#allocation5 + $0x250] sm:$0xff]
        %v326 = vld [vmem:[#allocation5 + $0x258] sm:$0xff]
        %v327 = vld [vmem:[#allocation5 + $0x260] sm:$0xff]
        %v328 = vld [vmem:[#allocation5 + $0x268] sm:$0xff]
        %v329 = vld [vmem:[#allocation5 + $0x270] sm:$0xff]
        %v330 = vld [vmem:[#allocation5 + $0x278] sm:$0xff]
        %v331 = vld [vmem:[#allocation5 + $0x280] sm:$0xff]
        %v332 = vld [vmem:[#allocation5 + $0x288] sm:$0xff]
        %v333 = vld [vmem:[#allocation5 + $0x290] sm:$0xff]
        %v334 = vld [vmem:[#allocation5 + $0x298] sm:$0xff]
        %v335 = vld [vmem:[#allocation5 + $0x2a0] sm:$0xff]
        %v336 = vld [vmem:[#allocation5 + $0x2a8] sm:$0xff]
        %v337 = vld [vmem:[#allocation5 + $0x2b0] sm:$0xff]
        %v338 = vld [vmem:[#allocation5 + $0x2b8] sm:$0xff]
        %v339 = vld [vmem:[#allocation5 + $0x2c0] sm:$0xff]
        %v340 = vld [vmem:[#allocation5 + $0x2c8] sm:$0xff]
        %v341 = vld [vmem:[#allocation5 + $0x2d0] sm:$0xff]
        %v342 = vld [vmem:[#allocation5 + $0x2d8] sm:$0xff]
        %v343 = vld [vmem:[#allocation5 + $0x2e0] sm:$0xff]
        %v344 = vld [vmem:[#allocation5 + $0x2e8] sm:$0xff]
        %v345 = vld [vmem:[#allocation5 + $0x2f0] sm:$0xff]
        %v346 = vld [vmem:[#allocation5 + $0x2f8] sm:$0xff]
        %v347 = vld [vmem:[#allocation5 + $0x300] sm:$0xff]
        %v348 = vld [vmem:[#allocation5 + $0x308] sm:$0xff]
        %v349 = vld [vmem:[#allocation5 + $0x310] sm:$0xff]
        %v350 = vld [vmem:[#allocation5 + $0x318] sm:$0xff]
        %v351 = vld [vmem:[#allocation5 + $0x320] sm:$0xff]
        %v352 = vld [vmem:[#allocation5 + $0x328] sm:$0xff]
        %v353 = vld [vmem:[#allocation5 + $0x330] sm:$0xff]
        %v354 = vld [vmem:[#allocation5 + $0x338] sm:$0xff]
        %v355 = vld [vmem:[#allocation5 + $0x340] sm:$0xff]
        %v356 = vld [vmem:[#allocation5 + $0x348] sm:$0xff]
        %v357 = vld [vmem:[#allocation5 + $0x350] sm:$0xff]
        %v358 = vld [vmem:[#allocation5 + $0x358] sm:$0xff]
        %v359 = vld [vmem:[#allocation5 + $0x360] sm:$0xff]
        %v360 = vld [vmem:[#allocation5 + $0x368] sm:$0xff]
        %v361 = vld [vmem:[#allocation5 + $0x370] sm:$0xff]
        %v362 = vld [vmem:[#allocation5 + $0x378] sm:$0xff]
        %v363 = vld [vmem:[#allocation5 + $0x380] sm:$0xff]
        %v364 = vld [vmem:[#allocation5 + $0x388] sm:$0xff]
        %v365 = vld [vmem:[#allocation5 + $0x390] sm:$0xff]
        %v366 = vld [vmem:[#allocation5 + $0x398] sm:$0xff]
        %v367 = vld [vmem:[#allocation5 + $0x3a0] sm:$0xff]
        %v368 = vld [vmem:[#allocation5 + $0x3a8] sm:$0xff]
        %v369 = vld [vmem:[#allocation5 + $0x3b0] sm:$0xff]
        %v370 = vld [vmem:[#allocation5 + $0x3b8] sm:$0xff]
        %v371 = vld [vmem:[#allocation5 + $0x3c0] sm:$0xff]
        %v372 = vld [vmem:[#allocation5 + $0x3c8] sm:$0xff]
        %v373 = vld [vmem:[#allocation5 + $0x3d0] sm:$0xff]
        %v374 = vld [vmem:[#allocation5 + $0x3d8] sm:$0xff]
        %v375 = vld [vmem:[#allocation5 + $0x3e0] sm:$0xff]
        %v376 = vld [vmem:[#allocation5 + $0x3e8] sm:$0xff]
        %v377 = vld [vmem:[#allocation5 + $0x3f0] sm:$0xff]
        %v378 = vld [vmem:[#allocation5 + $0x3f8] sm:$0xff]
        %v379 = vld [vmem:[#allocation5 + $0x400] sm:$0xff]
        %v380 = vld [vmem:[#allocation5 + $0x408] sm:$0xff]
        %v381 = vld [vmem:[#allocation5 + $0x410] sm:$0xff]
        %v382 = vld [vmem:[#allocation5 + $0x418] sm:$0xff]
        %v383 = vld [vmem:[#allocation5 + $0x420] sm:$0xff]
        %v384 = vld [vmem:[#allocation5 + $0x428] sm:$0xff]
        %v385 = vld [vmem:[#allocation5 + $0x430] sm:$0xff]
        %v386 = vld [vmem:[#allocation5 + $0x438] sm:$0xff]
        %v387 = vld [vmem:[#allocation5 + $0x440] sm:$0xff]
        %v388 = vld [vmem:[#allocation5 + $0x448] sm:$0xff]
        %v389 = vld [vmem:[#allocation5 + $0x450] sm:$0xff]
        %v390 = vld [vmem:[#allocation5 + $0x458] sm:$0xff]
        %v391 = vld [vmem:[#allocation5 + $0x460] sm:$0xff]
        %v392 = vld [vmem:[#allocation5 + $0x468] sm:$0xff]
        %v393 = vld [vmem:[#allocation5 + $0x470] sm:$0xff]
        %v394 = vld [vmem:[#allocation5 + $0x478] sm:$0xff]
        %v395 = vld [vmem:[#allocation5 + $0x480] sm:$0xff]
        %v396 = vld [vmem:[#allocation5 + $0x488] sm:$0xff]
        %v397 = vld [vmem:[#allocation5 + $0x490] sm:$0xff]
        %v398 = vld [vmem:[#allocation5 + $0x498] sm:$0xff]
        %v399 = vld [vmem:[#allocation5 + $0x4a0] sm:$0xff]
        %v400 = vld [vmem:[#allocation5 + $0x4a8] sm:$0xff]
        %v401 = vld [vmem:[#allocation5 + $0x4b0] sm:$0xff]
        %v402 = vld [vmem:[#allocation5 + $0x4b8] sm:$0xff]
        %v403 = vld [vmem:[#allocation5 + $0x4c0] sm:$0xff]
        %v404 = vld [vmem:[#allocation5 + $0x4c8] sm:$0xff]
        %v405 = vld [vmem:[#allocation5 + $0x4d0] sm:$0xff]
        %v406 = vld [vmem:[#allocation5 + $0x4d8] sm:$0xff]
        %v407 = vld [vmem:[#allocation5 + $0x4e0] sm:$0xff]
        %v408 = vld [vmem:[#allocation5 + $0x4e8] sm:$0xff]
        %v409 = vld [vmem:[#allocation5 + $0x4f0] sm:$0xff]
        %v410 = vld [vmem:[#allocation5 + $0x4f8] sm:$0xff]
        %v411 = vld [vmem:[#allocation5 + $0x500] sm:$0xff]
        %v412 = vld [vmem:[#allocation5 + $0x508] sm:$0xff]
        %v413 = vld [vmem:[#allocation5 + $0x510] sm:$0xff]
        %v414 = vld [vmem:[#allocation5 + $0x518] sm:$0xff]
        %v415 = vld [vmem:[#allocation5 + $0x520] sm:$0xff]
        %v416 = vld [vmem:[#allocation5 + $0x528] sm:$0xff]
        %v417 = vld [vmem:[#allocation5 + $0x530] sm:$0xff]
        %v418 = vld [vmem:[#allocation5 + $0x538] sm:$0xff]
        %v419 = vld [vmem:[#allocation5 + $0x540] sm:$0xff]
        %v420 = vld [vmem:[#allocation5 + $0x548] sm:$0xff]
        %v421 = vld [vmem:[#allocation5 + $0x550] sm:$0xff]
        %v422 = vld [vmem:[#allocation5 + $0x558] sm:$0xff]
        %v423 = vld [vmem:[#allocation5 + $0x560] sm:$0xff]
        %v424 = vld [vmem:[#allocation5 + $0x568] sm:$0xff]
        %v425 = vld [vmem:[#allocation5 + $0x570] sm:$0xff]
        %v426 = vld [vmem:[#allocation5 + $0x578] sm:$0xff]
        %v427 = vld [vmem:[#allocation5 + $0x580] sm:$0xff]
        %v428 = vld [vmem:[#allocation5 + $0x588] sm:$0xff]
        %v429 = vld [vmem:[#allocation5 + $0x590] sm:$0xff]
        %v430 = vld [vmem:[#allocation5 + $0x598] sm:$0xff]
        %v431 = vld [vmem:[#allocation5 + $0x5a0] sm:$0xff]
        %v432 = vld [vmem:[#allocation5 + $0x5a8] sm:$0xff]
        %v433 = vld [vmem:[#allocation5 + $0x5b0] sm:$0xff]
        %v434 = vld [vmem:[#allocation5 + $0x5b8] sm:$0xff]
        %v435 = vld [vmem:[#allocation5 + $0x5c0] sm:$0xff]
        %v436 = vld [vmem:[#allocation5 + $0x5c8] sm:$0xff]
        %v437 = vld [vmem:[#allocation5 + $0x5d0] sm:$0xff]
        %v438 = vld [vmem:[#allocation5 + $0x5d8] sm:$0xff]
        %v439 = vld [vmem:[#allocation5 + $0x5e0] sm:$0xff]
        %v440 = vld [vmem:[#allocation5 + $0x5e8] sm:$0xff]
        %v441 = vld [vmem:[#allocation5 + $0x5f0] sm:$0xff]
        %v442 = vld [vmem:[#allocation5 + $0x5f8] sm:$0xff]
        %v443 = vld [vmem:[#allocation5 + $0x600] sm:$0xff]
        %v444 = vld [vmem:[#allocation5 + $0x608] sm:$0xff]
        %v445 = vld [vmem:[#allocation5 + $0x610] sm:$0xff]
        %v446 = vld [vmem:[#allocation5 + $0x618] sm:$0xff]
        %v447 = vld [vmem:[#allocation5 + $0x620] sm:$0xff]
        %v448 = vld [vmem:[#allocation5 + $0x628] sm:$0xff]
        %v449 = vld [vmem:[#allocation5 + $0x630] sm:$0xff]
        %v450 = vld [vmem:[#allocation5 + $0x638] sm:$0xff]
        %v451 = vld [vmem:[#allocation5 + $0x640] sm:$0xff]
        %v452 = vld [vmem:[#allocation5 + $0x648] sm:$0xff]
        %v453 = vld [vmem:[#allocation5 + $0x650] sm:$0xff]
        %v454 = vld [vmem:[#allocation5 + $0x658] sm:$0xff]
        %v455 = vld [vmem:[#allocation5 + $0x660] sm:$0xff]
        %v456 = vld [vmem:[#allocation5 + $0x668] sm:$0xff]
        %v457 = vld [vmem:[#allocation5 + $0x670] sm:$0xff]
        %v458 = vld [vmem:[#allocation5 + $0x678] sm:$0xff]
        %v459 = vld [vmem:[#allocation5 + $0x680] sm:$0xff]
        %v460 = vld [vmem:[#allocation5 + $0x688] sm:$0xff]
        %v461 = vld [vmem:[#allocation5 + $0x690] sm:$0xff]
        %v462 = vld [vmem:[#allocation5 + $0x698] sm:$0xff]
        %v463 = vld [vmem:[#allocation5 + $0x6a0] sm:$0xff]
        %v464 = vld [vmem:[#allocation5 + $0x6a8] sm:$0xff]
        %v465 = vld [vmem:[#allocation5 + $0x6b0] sm:$0xff]
        %v466 = vld [vmem:[#allocation5 + $0x6b8] sm:$0xff]
        %v467 = vld [vmem:[#allocation5 + $0x6c0] sm:$0xff]
        %v468 = vld [vmem:[#allocation5 + $0x6c8] sm:$0xff]
        %v469 = vld [vmem:[#allocation5 + $0x6d0] sm:$0xff]
        %v470 = vld [vmem:[#allocation5 + $0x6d8] sm:$0xff]
        %v471 = vld [vmem:[#allocation5 + $0x6e0] sm:$0xff]
        %v472 = vld [vmem:[#allocation5 + $0x6e8] sm:$0xff]
        %v473 = vld [vmem:[#allocation5 + $0x6f0] sm:$0xff]
        %v474 = vld [vmem:[#allocation5 + $0x6f8] sm:$0xff]
        %v475 = vld [vmem:[#allocation5 + $0x700] sm:$0xff]
        %v476 = vld [vmem:[#allocation5 + $0x708] sm:$0xff]
        %v477 = vld [vmem:[#allocation5 + $0x710] sm:$0xff]
        %v478 = vld [vmem:[#allocation5 + $0x718] sm:$0xff]
        %v479 = vld [vmem:[#allocation5 + $0x720] sm:$0xff]
        %v480 = vld [vmem:[#allocation5 + $0x728] sm:$0xff]
        %v481 = vld [vmem:[#allocation5 + $0x730] sm:$0xff]
        %v482 = vld [vmem:[#allocation5 + $0x738] sm:$0xff]
        %v483 = vld [vmem:[#allocation5 + $0x740] sm:$0xff]
        %v484 = vld [vmem:[#allocation5 + $0x748] sm:$0xff]
        %v485 = vld [vmem:[#allocation5 + $0x750] sm:$0xff]
        %v486 = vld [vmem:[#allocation5 + $0x758] sm:$0xff]
        %v487 = vld [vmem:[#allocation5 + $0x760] sm:$0xff]
        %v488 = vld [vmem:[#allocation5 + $0x768] sm:$0xff]
        %v489 = vld [vmem:[#allocation5 + $0x770] sm:$0xff]
        %v490 = vld [vmem:[#allocation5 + $0x778] sm:$0xff]
        %v491 = vld [vmem:[#allocation5 + $0x780] sm:$0xff]
        %v492 = vld [vmem:[#allocation5 + $0x788] sm:$0xff]
        %v493 = vld [vmem:[#allocation5 + $0x790] sm:$0xff]
        %v494 = vld [vmem:[#allocation5 + $0x798] sm:$0xff]
        %v495 = vld [vmem:[#allocation5 + $0x7a0] sm:$0xff]
        %v496 = vld [vmem:[#allocation5 + $0x7a8] sm:$0xff]
        %v497 = vld [vmem:[#allocation5 + $0x7b0] sm:$0xff]
        %v498 = vld [vmem:[#allocation5 + $0x7b8] sm:$0xff]
        %v499 = vld [vmem:[#allocation5 + $0x7c0] sm:$0xff]
        %v500 = vld [vmem:[#allocation5 + $0x7c8] sm:$0xff]
        %v501 = vld [vmem:[#allocation5 + $0x7d0] sm:$0xff]
        %v502 = vld [vmem:[#allocation5 + $0x7d8] sm:$0xff]
        %v503 = vld [vmem:[#allocation5 + $0x7e0] sm:$0xff]
        %v504 = vld [vmem:[#allocation5 + $0x7e8] sm:$0xff]
        %v505 = vld [vmem:[#allocation5 + $0x7f0] sm:$0xff]
        %v506 = vld [vmem:[#allocation5 + $0x7f8] sm:$0xff]
        %v507 = vld [vmem:[#allocation5 + $0x800] sm:$0xff]
        %v508 = vld [vmem:[#allocation5 + $0x808] sm:$0xff]
        %v509 = vld [vmem:[#allocation5 + $0x810] sm:$0xff]
        %v510 = vld [vmem:[#allocation5 + $0x818] sm:$0xff]
        %v511 = vld [vmem:[#allocation5 + $0x820] sm:$0xff]
        %v512 = vld [vmem:[#allocation5 + $0x828] sm:$0xff]
        %v513 = vld [vmem:[#allocation5 + $0x830] sm:$0xff]
        %v514 = vld [vmem:[#allocation5 + $0x838] sm:$0xff]
        %v515 = vld [vmem:[#allocation5 + $0x840] sm:$0xff]
        %v516 = vld [vmem:[#allocation5 + $0x848] sm:$0xff]
        %v517 = vld [vmem:[#allocation5 + $0x850] sm:$0xff]
        %v518 = vld [vmem:[#allocation5 + $0x858] sm:$0xff]
        %v519 = vld [vmem:[#allocation5 + $0x860] sm:$0xff]
        %v520 = vld [vmem:[#allocation5 + $0x868] sm:$0xff]
        %v521 = vld [vmem:[#allocation5 + $0x870] sm:$0xff]
        %v522 = vld [vmem:[#allocation5 + $0x878] sm:$0xff]
        %v523 = vld [vmem:[#allocation5 + $0x880] sm:$0xff]
        %v524 = vld [vmem:[#allocation5 + $0x888] sm:$0xff]
        %v525 = vld [vmem:[#allocation5 + $0x890] sm:$0xff]
        %v526 = vld [vmem:[#allocation5 + $0x898] sm:$0xff]
        %v527 = vld [vmem:[#allocation5 + $0x8a0] sm:$0xff]
        %v528 = vld [vmem:[#allocation5 + $0x8a8] sm:$0xff]
        %v529 = vld [vmem:[#allocation5 + $0x8b0] sm:$0xff]
        %v530 = vld [vmem:[#allocation5 + $0x8b8] sm:$0xff]
        %v531 = vld [vmem:[#allocation5 + $0x8c0] sm:$0xff]
        %v532 = vld [vmem:[#allocation5 + $0x8c8] sm:$0xff]
        %v533 = vld [vmem:[#allocation5 + $0x8d0] sm:$0xff]
        %v534 = vld [vmem:[#allocation5 + $0x8d8] sm:$0xff]
        %v535 = vld [vmem:[#allocation5 + $0x8e0] sm:$0xff]
        %v536 = vld [vmem:[#allocation5 + $0x8e8] sm:$0xff]
        %v537 = vld [vmem:[#allocation5 + $0x8f0] sm:$0xff]
        %v538 = vld [vmem:[#allocation5 + $0x8f8] sm:$0xff]
        %v545 = vunpack.c.l.b16 %v245
        %v546 = vunpack.c.h.b16 %v245
        %v547 = vunpack.c.l.b16 %v246
        %v548 = vunpack.c.h.b16 %v246
        %v549 = vunpack.c.l.b16 %v247
        %v550 = vunpack.c.h.b16 %v247
        %v551 = vunpack.c.l.b16 %v248
        %v552 = vunpack.c.h.b16 %v248
        %v553 = vunpack.c.l.b16 %v249
        %v554 = vunpack.c.h.b16 %v249
        %v555 = vunpack.c.l.b16 %v250
        %v556 = vunpack.c.h.b16 %v250
        %v557 = vpack.c.b16 %v551, %v545
        %v558 = vpack.c.b16 %v552, %v546
        %v559 = vpack.c.b16 %v553, %v547
        %v560 = vpack.c.b16 %v554, %v548
        %v561 = vpack.c.b16 %v555, %v549
        %v562 = vpack.c.b16 %v556, %v550
        %v857 = vunpack.c.l.b16 %v251
        %v858 = vunpack.c.h.b16 %v251
        %v859 = vunpack.c.l.b16 %v252
        %v860 = vunpack.c.h.b16 %v252
        %v861 = vunpack.c.l.b16 %v253
        %v862 = vunpack.c.h.b16 %v253
        %v863 = vunpack.c.l.b16 %v254
        %v864 = vunpack.c.h.b16 %v254
        %v865 = vunpack.c.l.b16 %v255
        %v866 = vunpack.c.h.b16 %v255
        %v867 = vunpack.c.l.b16 %v256
        %v868 = vunpack.c.h.b16 %v256
        %v869 = vunpack.c.l.b16 %v257
        %v870 = vunpack.c.h.b16 %v257
        %v871 = vunpack.c.l.b16 %v258
        %v872 = vunpack.c.h.b16 %v258
        %v873 = vunpack.c.l.b16 %v259
        %v874 = vunpack.c.h.b16 %v259
        %v875 = vunpack.c.l.b16 %v260
        %v876 = vunpack.c.h.b16 %v260
        %v877 = vunpack.c.l.b16 %v261
        %v878 = vunpack.c.h.b16 %v261
        %v879 = vunpack.c.l.b16 %v262
        %v880 = vunpack.c.h.b16 %v262
        %v881 = vunpack.c.l.b16 %v263
        %v882 = vunpack.c.h.b16 %v263
        %v883 = vunpack.c.l.b16 %v264
        %v884 = vunpack.c.h.b16 %v264
        %v885 = vunpack.c.l.b16 %v265
        %v886 = vunpack.c.h.b16 %v265
        %v887 = vunpack.c.l.b16 %v266
        %v888 = vunpack.c.h.b16 %v266
        %v889 = vunpack.c.l.b16 %v267
        %v890 = vunpack.c.h.b16 %v267
        %v891 = vunpack.c.l.b16 %v268
        %v892 = vunpack.c.h.b16 %v268
        %v893 = vunpack.c.l.b16 %v269
        %v894 = vunpack.c.h.b16 %v269
        %v895 = vunpack.c.l.b16 %v270
        %v896 = vunpack.c.h.b16 %v270
        %v897 = vunpack.c.l.b16 %v271
        %v898 = vunpack.c.h.b16 %v271
        %v899 = vunpack.c.l.b16 %v272
        %v900 = vunpack.c.h.b16 %v272
        %v901 = vunpack.c.l.b16 %v273
        %v902 = vunpack.c.h.b16 %v273
        %v903 = vunpack.c.l.b16 %v274
        %v904 = vunpack.c.h.b16 %v274
        %v905 = vunpack.c.l.b16 %v275
        %v906 = vunpack.c.h.b16 %v275
        %v907 = vunpack.c.l.b16 %v276
        %v908 = vunpack.c.h.b16 %v276
        %v909 = vunpack.c.l.b16 %v277
        %v910 = vunpack.c.h.b16 %v277
        %v911 = vunpack.c.l.b16 %v278
        %v912 = vunpack.c.h.b16 %v278
        %v913 = vunpack.c.l.b16 %v279
        %v914 = vunpack.c.h.b16 %v279
        %v915 = vunpack.c.l.b16 %v280
        %v916 = vunpack.c.h.b16 %v280
        %v917 = vunpack.c.l.b16 %v281
        %v918 = vunpack.c.h.b16 %v281
        %v919 = vunpack.c.l.b16 %v282
        %v920 = vunpack.c.h.b16 %v282
        %v921 = vunpack.c.l.b16 %v283
        %v922 = vunpack.c.h.b16 %v283
        %v923 = vunpack.c.l.b16 %v284
        %v924 = vunpack.c.h.b16 %v284
        %v925 = vunpack.c.l.b16 %v285
        %v926 = vunpack.c.h.b16 %v285
        %v927 = vunpack.c.l.b16 %v286
        %v928 = vunpack.c.h.b16 %v286
        %v929 = vunpack.c.l.b16 %v287
        %v930 = vunpack.c.h.b16 %v287
        %v931 = vunpack.c.l.b16 %v288
        %v932 = vunpack.c.h.b16 %v288
        %v933 = vunpack.c.l.b16 %v289
        %v934 = vunpack.c.h.b16 %v289
        %v935 = vunpack.c.l.b16 %v290
        %v936 = vunpack.c.h.b16 %v290
        %v937 = vunpack.c.l.b16 %v291
        %v938 = vunpack.c.h.b16 %v291
        %v939 = vunpack.c.l.b16 %v292
        %v940 = vunpack.c.h.b16 %v292
        %v941 = vunpack.c.l.b16 %v293
        %v942 = vunpack.c.h.b16 %v293
        %v943 = vunpack.c.l.b16 %v294
        %v944 = vunpack.c.h.b16 %v294
        %v945 = vunpack.c.l.b16 %v295
        %v946 = vunpack.c.h.b16 %v295
        %v947 = vunpack.c.l.b16 %v296
        %v948 = vunpack.c.h.b16 %v296
        %v949 = vunpack.c.l.b16 %v297
        %v950 = vunpack.c.h.b16 %v297
        %v951 = vunpack.c.l.b16 %v298
        %v952 = vunpack.c.h.b16 %v298
        %v953 = vunpack.c.l.b16 %v299
        %v954 = vunpack.c.h.b16 %v299
        %v955 = vunpack.c.l.b16 %v300
        %v956 = vunpack.c.h.b16 %v300
        %v957 = vunpack.c.l.b16 %v301
        %v958 = vunpack.c.h.b16 %v301
        %v959 = vunpack.c.l.b16 %v302
        %v960 = vunpack.c.h.b16 %v302
        %v961 = vunpack.c.l.b16 %v303
        %v962 = vunpack.c.h.b16 %v303
        %v963 = vunpack.c.l.b16 %v304
        %v964 = vunpack.c.h.b16 %v304
        %v965 = vunpack.c.l.b16 %v305
        %v966 = vunpack.c.h.b16 %v305
        %v967 = vunpack.c.l.b16 %v306
        %v968 = vunpack.c.h.b16 %v306
        %v969 = vunpack.c.l.b16 %v307
        %v970 = vunpack.c.h.b16 %v307
        %v971 = vunpack.c.l.b16 %v308
        %v972 = vunpack.c.h.b16 %v308
        %v973 = vunpack.c.l.b16 %v309
        %v974 = vunpack.c.h.b16 %v309
        %v975 = vunpack.c.l.b16 %v310
        %v976 = vunpack.c.h.b16 %v310
        %v977 = vunpack.c.l.b16 %v311
        %v978 = vunpack.c.h.b16 %v311
        %v979 = vunpack.c.l.b16 %v312
        %v980 = vunpack.c.h.b16 %v312
        %v981 = vunpack.c.l.b16 %v313
        %v982 = vunpack.c.h.b16 %v313
        %v983 = vunpack.c.l.b16 %v314
        %v984 = vunpack.c.h.b16 %v314
        %v985 = vunpack.c.l.b16 %v315
        %v986 = vunpack.c.h.b16 %v315
        %v987 = vunpack.c.l.b16 %v316
        %v988 = vunpack.c.h.b16 %v316
        %v989 = vunpack.c.l.b16 %v317
        %v990 = vunpack.c.h.b16 %v317
        %v991 = vunpack.c.l.b16 %v318
        %v992 = vunpack.c.h.b16 %v318
        %v993 = vunpack.c.l.b16 %v319
        %v994 = vunpack.c.h.b16 %v319
        %v995 = vunpack.c.l.b16 %v320
        %v996 = vunpack.c.h.b16 %v320
        %v997 = vunpack.c.l.b16 %v321
        %v998 = vunpack.c.h.b16 %v321
        %v999 = vunpack.c.l.b16 %v322
        %v1000 = vunpack.c.h.b16 %v322
        %v1001 = vunpack.c.l.b16 %v323
        %v1002 = vunpack.c.h.b16 %v323
        %v1003 = vunpack.c.l.b16 %v324
        %v1004 = vunpack.c.h.b16 %v324
        %v1005 = vunpack.c.l.b16 %v325
        %v1006 = vunpack.c.h.b16 %v325
        %v1007 = vunpack.c.l.b16 %v326
        %v1008 = vunpack.c.h.b16 %v326
        %v1009 = vunpack.c.l.b16 %v327
        %v1010 = vunpack.c.h.b16 %v327
        %v1011 = vunpack.c.l.b16 %v328
        %v1012 = vunpack.c.h.b16 %v328
        %v1013 = vunpack.c.l.b16 %v329
        %v1014 = vunpack.c.h.b16 %v329
        %v1015 = vunpack.c.l.b16 %v330
        %v1016 = vunpack.c.h.b16 %v330
        %v1017 = vunpack.c.l.b16 %v331
        %v1018 = vunpack.c.h.b16 %v331
        %v1019 = vunpack.c.l.b16 %v332
        %v1020 = vunpack.c.h.b16 %v332
        %v1021 = vunpack.c.l.b16 %v333
        %v1022 = vunpack.c.h.b16 %v333
        %v1023 = vunpack.c.l.b16 %v334
        %v1024 = vunpack.c.h.b16 %v334
        %v1025 = vunpack.c.l.b16 %v335
        %v1026 = vunpack.c.h.b16 %v335
        %v1027 = vunpack.c.l.b16 %v336
        %v1028 = vunpack.c.h.b16 %v336
        %v1029 = vunpack.c.l.b16 %v337
        %v1030 = vunpack.c.h.b16 %v337
        %v1031 = vunpack.c.l.b16 %v338
        %v1032 = vunpack.c.h.b16 %v338
        %v1033 = vunpack.c.l.b16 %v339
        %v1034 = vunpack.c.h.b16 %v339
        %v1035 = vunpack.c.l.b16 %v340
        %v1036 = vunpack.c.h.b16 %v340
        %v1037 = vunpack.c.l.b16 %v341
        %v1038 = vunpack.c.h.b16 %v341
        %v1039 = vunpack.c.l.b16 %v342
        %v1040 = vunpack.c.h.b16 %v342
        %v1041 = vunpack.c.l.b16 %v343
        %v1042 = vunpack.c.h.b16 %v343
        %v1043 = vunpack.c.l.b16 %v344
        %v1044 = vunpack.c.h.b16 %v344
        %v1045 = vunpack.c.l.b16 %v345
        %v1046 = vunpack.c.h.b16 %v345
        %v1047 = vunpack.c.l.b16 %v346
        %v1048 = vunpack.c.h.b16 %v346
        %v1049 = vunpack.c.l.b16 %v347
        %v1050 = vunpack.c.h.b16 %v347
        %v1051 = vunpack.c.l.b16 %v348
        %v1052 = vunpack.c.h.b16 %v348
        %v1053 = vunpack.c.l.b16 %v349
        %v1054 = vunpack.c.h.b16 %v349
        %v1055 = vunpack.c.l.b16 %v350
        %v1056 = vunpack.c.h.b16 %v350
        %v1057 = vunpack.c.l.b16 %v351
        %v1058 = vunpack.c.h.b16 %v351
        %v1059 = vunpack.c.l.b16 %v352
        %v1060 = vunpack.c.h.b16 %v352
        %v1061 = vunpack.c.l.b16 %v353
        %v1062 = vunpack.c.h.b16 %v353
        %v1063 = vunpack.c.l.b16 %v354
        %v1064 = vunpack.c.h.b16 %v354
        %v1065 = vunpack.c.l.b16 %v355
        %v1066 = vunpack.c.h.b16 %v355
        %v1067 = vunpack.c.l.b16 %v356
        %v1068 = vunpack.c.h.b16 %v356
        %v1069 = vunpack.c.l.b16 %v357
        %v1070 = vunpack.c.h.b16 %v357
        %v1071 = vunpack.c.l.b16 %v358
        %v1072 = vunpack.c.h.b16 %v358
        %v1073 = vunpack.c.l.b16 %v359
        %v1074 = vunpack.c.h.b16 %v359
        %v1075 = vunpack.c.l.b16 %v360
        %v1076 = vunpack.c.h.b16 %v360
        %v1077 = vunpack.c.l.b16 %v361
        %v1078 = vunpack.c.h.b16 %v361
        %v1079 = vunpack.c.l.b16 %v362
        %v1080 = vunpack.c.h.b16 %v362
        %v1081 = vunpack.c.l.b16 %v363
        %v1082 = vunpack.c.h.b16 %v363
        %v1083 = vunpack.c.l.b16 %v364
        %v1084 = vunpack.c.h.b16 %v364
        %v1085 = vunpack.c.l.b16 %v365
        %v1086 = vunpack.c.h.b16 %v365
        %v1087 = vunpack.c.l.b16 %v366
        %v1088 = vunpack.c.h.b16 %v366
        %v1089 = vunpack.c.l.b16 %v367
        %v1090 = vunpack.c.h.b16 %v367
        %v1091 = vunpack.c.l.b16 %v368
        %v1092 = vunpack.c.h.b16 %v368
        %v1093 = vunpack.c.l.b16 %v369
        %v1094 = vunpack.c.h.b16 %v369
        %v1095 = vunpack.c.l.b16 %v370
        %v1096 = vunpack.c.h.b16 %v370
        %v1097 = vunpack.c.l.b16 %v371
        %v1098 = vunpack.c.h.b16 %v371
        %v1099 = vunpack.c.l.b16 %v372
        %v1100 = vunpack.c.h.b16 %v372
        %v1101 = vunpack.c.l.b16 %v373
        %v1102 = vunpack.c.h.b16 %v373
        %v1103 = vunpack.c.l.b16 %v374
        %v1104 = vunpack.c.h.b16 %v374
        %v1105 = vunpack.c.l.b16 %v375
        %v1106 = vunpack.c.h.b16 %v375
        %v1107 = vunpack.c.l.b16 %v376
        %v1108 = vunpack.c.h.b16 %v376
        %v1109 = vunpack.c.l.b16 %v377
        %v1110 = vunpack.c.h.b16 %v377
        %v1111 = vunpack.c.l.b16 %v378
        %v1112 = vunpack.c.h.b16 %v378
        %v1113 = vunpack.c.l.b16 %v379
        %v1114 = vunpack.c.h.b16 %v379
        %v1115 = vunpack.c.l.b16 %v380
        %v1116 = vunpack.c.h.b16 %v380
        %v1117 = vunpack.c.l.b16 %v381
        %v1118 = vunpack.c.h.b16 %v381
        %v1119 = vunpack.c.l.b16 %v382
        %v1120 = vunpack.c.h.b16 %v382
        %v1121 = vunpack.c.l.b16 %v383
        %v1122 = vunpack.c.h.b16 %v383
        %v1123 = vunpack.c.l.b16 %v384
        %v1124 = vunpack.c.h.b16 %v384
        %v1125 = vunpack.c.l.b16 %v385
        %v1126 = vunpack.c.h.b16 %v385
        %v1127 = vunpack.c.l.b16 %v386
        %v1128 = vunpack.c.h.b16 %v386
        %v1129 = vunpack.c.l.b16 %v387
        %v1130 = vunpack.c.h.b16 %v387
        %v1131 = vunpack.c.l.b16 %v388
        %v1132 = vunpack.c.h.b16 %v388
        %v1133 = vunpack.c.l.b16 %v389
        %v1134 = vunpack.c.h.b16 %v389
        %v1135 = vunpack.c.l.b16 %v390
        %v1136 = vunpack.c.h.b16 %v390
        %v1137 = vunpack.c.l.b16 %v391
        %v1138 = vunpack.c.h.b16 %v391
        %v1139 = vunpack.c.l.b16 %v392
        %v1140 = vunpack.c.h.b16 %v392
        %v1141 = vunpack.c.l.b16 %v393
        %v1142 = vunpack.c.h.b16 %v393
        %v1143 = vunpack.c.l.b16 %v394
        %v1144 = vunpack.c.h.b16 %v394
        %v1145 = vunpack.c.l.b16 %v395
        %v1146 = vunpack.c.h.b16 %v395
        %v1147 = vunpack.c.l.b16 %v396
        %v1148 = vunpack.c.h.b16 %v396
        %v1149 = vunpack.c.l.b16 %v397
        %v1150 = vunpack.c.h.b16 %v397
        %v1151 = vunpack.c.l.b16 %v398
        %v1152 = vunpack.c.h.b16 %v398
        %v1153 = vunpack.c.l.b16 %v399
        %v1154 = vunpack.c.h.b16 %v399
        %v1155 = vunpack.c.l.b16 %v400
        %v1156 = vunpack.c.h.b16 %v400
        %v1157 = vunpack.c.l.b16 %v401
        %v1158 = vunpack.c.h.b16 %v401
        %v1159 = vunpack.c.l.b16 %v402
        %v1160 = vunpack.c.h.b16 %v402
        %v1161 = vunpack.c.l.b16 %v403
        %v1162 = vunpack.c.h.b16 %v403
        %v1163 = vunpack.c.l.b16 %v404
        %v1164 = vunpack.c.h.b16 %v404
        %v1165 = vunpack.c.l.b16 %v405
        %v1166 = vunpack.c.h.b16 %v405
        %v1167 = vunpack.c.l.b16 %v406
        %v1168 = vunpack.c.h.b16 %v406
        %v1169 = vunpack.c.l.b16 %v407
        %v1170 = vunpack.c.h.b16 %v407
        %v1171 = vunpack.c.l.b16 %v408
        %v1172 = vunpack.c.h.b16 %v408
        %v1173 = vunpack.c.l.b16 %v409
        %v1174 = vunpack.c.h.b16 %v409
        %v1175 = vunpack.c.l.b16 %v410
        %v1176 = vunpack.c.h.b16 %v410
        %v1177 = vunpack.c.l.b16 %v411
        %v1178 = vunpack.c.h.b16 %v411
        %v1179 = vunpack.c.l.b16 %v412
        %v1180 = vunpack.c.h.b16 %v412
        %v1181 = vunpack.c.l.b16 %v413
        %v1182 = vunpack.c.h.b16 %v413
        %v1183 = vunpack.c.l.b16 %v414
        %v1184 = vunpack.c.h.b16 %v414
        %v1185 = vunpack.c.l.b16 %v415
        %v1186 = vunpack.c.h.b16 %v415
        %v1187 = vunpack.c.l.b16 %v416
        %v1188 = vunpack.c.h.b16 %v416
        %v1189 = vunpack.c.l.b16 %v417
        %v1190 = vunpack.c.h.b16 %v417
        %v1191 = vunpack.c.l.b16 %v418
        %v1192 = vunpack.c.h.b16 %v418
        %v1193 = vunpack.c.l.b16 %v419
        %v1194 = vunpack.c.h.b16 %v419
        %v1195 = vunpack.c.l.b16 %v420
        %v1196 = vunpack.c.h.b16 %v420
        %v1197 = vunpack.c.l.b16 %v421
        %v1198 = vunpack.c.h.b16 %v421
        %v1199 = vunpack.c.l.b16 %v422
        %v1200 = vunpack.c.h.b16 %v422
        %v1201 = vunpack.c.l.b16 %v423
        %v1202 = vunpack.c.h.b16 %v423
        %v1203 = vunpack.c.l.b16 %v424
        %v1204 = vunpack.c.h.b16 %v424
        %v1205 = vunpack.c.l.b16 %v425
        %v1206 = vunpack.c.h.b16 %v425
        %v1207 = vunpack.c.l.b16 %v426
        %v1208 = vunpack.c.h.b16 %v426
        %v1209 = vunpack.c.l.b16 %v427
        %v1210 = vunpack.c.h.b16 %v427
        %v1211 = vunpack.c.l.b16 %v428
        %v1212 = vunpack.c.h.b16 %v428
        %v1213 = vunpack.c.l.b16 %v429
        %v1214 = vunpack.c.h.b16 %v429
        %v1215 = vunpack.c.l.b16 %v430
        %v1216 = vunpack.c.h.b16 %v430
        %v1217 = vunpack.c.l.b16 %v431
        %v1218 = vunpack.c.h.b16 %v431
        %v1219 = vunpack.c.l.b16 %v432
        %v1220 = vunpack.c.h.b16 %v432
        %v1221 = vunpack.c.l.b16 %v433
        %v1222 = vunpack.c.h.b16 %v433
        %v1223 = vunpack.c.l.b16 %v434
        %v1224 = vunpack.c.h.b16 %v434
        %v1225 = vunpack.c.l.b16 %v435
        %v1226 = vunpack.c.h.b16 %v435
        %v1227 = vunpack.c.l.b16 %v436
        %v1228 = vunpack.c.h.b16 %v436
        %v1229 = vunpack.c.l.b16 %v437
        %v1230 = vunpack.c.h.b16 %v437
        %v1231 = vunpack.c.l.b16 %v438
        %v1232 = vunpack.c.h.b16 %v438
        %v1233 = vunpack.c.l.b16 %v439
        %v1234 = vunpack.c.h.b16 %v439
        %v1235 = vunpack.c.l.b16 %v440
        %v1236 = vunpack.c.h.b16 %v440
        %v1237 = vunpack.c.l.b16 %v441
        %v1238 = vunpack.c.h.b16 %v441
        %v1239 = vunpack.c.l.b16 %v442
        %v1240 = vunpack.c.h.b16 %v442
        %v1241 = vunpack.c.l.b16 %v443
        %v1242 = vunpack.c.h.b16 %v443
        %v1243 = vunpack.c.l.b16 %v444
        %v1244 = vunpack.c.h.b16 %v444
        %v1245 = vunpack.c.l.b16 %v445
        %v1246 = vunpack.c.h.b16 %v445
        %v1247 = vunpack.c.l.b16 %v446
        %v1248 = vunpack.c.h.b16 %v446
        %v1249 = vunpack.c.l.b16 %v447
        %v1250 = vunpack.c.h.b16 %v447
        %v1251 = vunpack.c.l.b16 %v448
        %v1252 = vunpack.c.h.b16 %v448
        %v1253 = vunpack.c.l.b16 %v449
        %v1254 = vunpack.c.h.b16 %v449
        %v1255 = vunpack.c.l.b16 %v450
        %v1256 = vunpack.c.h.b16 %v450
        %v1257 = vunpack.c.l.b16 %v451
        %v1258 = vunpack.c.h.b16 %v451
        %v1259 = vunpack.c.l.b16 %v452
        %v1260 = vunpack.c.h.b16 %v452
        %v1261 = vunpack.c.l.b16 %v453
        %v1262 = vunpack.c.h.b16 %v453
        %v1263 = vunpack.c.l.b16 %v454
        %v1264 = vunpack.c.h.b16 %v454
        %v1265 = vunpack.c.l.b16 %v455
        %v1266 = vunpack.c.h.b16 %v455
        %v1267 = vunpack.c.l.b16 %v456
        %v1268 = vunpack.c.h.b16 %v456
        %v1269 = vunpack.c.l.b16 %v457
        %v1270 = vunpack.c.h.b16 %v457
        %v1271 = vunpack.c.l.b16 %v458
        %v1272 = vunpack.c.h.b16 %v458
        %v1273 = vunpack.c.l.b16 %v459
        %v1274 = vunpack.c.h.b16 %v459
        %v1275 = vunpack.c.l.b16 %v460
        %v1276 = vunpack.c.h.b16 %v460
        %v1277 = vunpack.c.l.b16 %v461
        %v1278 = vunpack.c.h.b16 %v461
        %v1279 = vunpack.c.l.b16 %v462
        %v1280 = vunpack.c.h.b16 %v462
        %v1281 = vunpack.c.l.b16 %v463
        %v1282 = vunpack.c.h.b16 %v463
        %v1283 = vunpack.c.l.b16 %v464
        %v1284 = vunpack.c.h.b16 %v464
        %v1285 = vunpack.c.l.b16 %v465
        %v1286 = vunpack.c.h.b16 %v465
        %v1287 = vunpack.c.l.b16 %v466
        %v1288 = vunpack.c.h.b16 %v466
        %v1289 = vunpack.c.l.b16 %v467
        %v1290 = vunpack.c.h.b16 %v467
        %v1291 = vunpack.c.l.b16 %v468
        %v1292 = vunpack.c.h.b16 %v468
        %v1293 = vunpack.c.l.b16 %v469
        %v1294 = vunpack.c.h.b16 %v469
        %v1295 = vunpack.c.l.b16 %v470
        %v1296 = vunpack.c.h.b16 %v470
        %v1297 = vunpack.c.l.b16 %v471
        %v1298 = vunpack.c.h.b16 %v471
        %v1299 = vunpack.c.l.b16 %v472
        %v1300 = vunpack.c.h.b16 %v472
        %v1301 = vunpack.c.l.b16 %v473
        %v1302 = vunpack.c.h.b16 %v473
        %v1303 = vunpack.c.l.b16 %v474
        %v1304 = vunpack.c.h.b16 %v474
        %v1305 = vunpack.c.l.b16 %v475
        %v1306 = vunpack.c.h.b16 %v475
        %v1307 = vunpack.c.l.b16 %v476
        %v1308 = vunpack.c.h.b16 %v476
        %v1309 = vunpack.c.l.b16 %v477
        %v1310 = vunpack.c.h.b16 %v477
        %v1311 = vunpack.c.l.b16 %v478
        %v1312 = vunpack.c.h.b16 %v478
        %v1313 = vunpack.c.l.b16 %v479
        %v1314 = vunpack.c.h.b16 %v479
        %v1315 = vunpack.c.l.b16 %v480
        %v1316 = vunpack.c.h.b16 %v480
        %v1317 = vunpack.c.l.b16 %v481
        %v1318 = vunpack.c.h.b16 %v481
        %v1319 = vunpack.c.l.b16 %v482
        %v1320 = vunpack.c.h.b16 %v482
        %v1321 = vunpack.c.l.b16 %v483
        %v1322 = vunpack.c.h.b16 %v483
        %v1323 = vunpack.c.l.b16 %v484
        %v1324 = vunpack.c.h.b16 %v484
        %v1325 = vunpack.c.l.b16 %v485
        %v1326 = vunpack.c.h.b16 %v485
        %v1327 = vunpack.c.l.b16 %v486
        %v1328 = vunpack.c.h.b16 %v486
        %v1329 = vunpack.c.l.b16 %v487
        %v1330 = vunpack.c.h.b16 %v487
        %v1331 = vunpack.c.l.b16 %v488
        %v1332 = vunpack.c.h.b16 %v488
        %v1333 = vunpack.c.l.b16 %v489
        %v1334 = vunpack.c.h.b16 %v489
        %v1335 = vunpack.c.l.b16 %v490
        %v1336 = vunpack.c.h.b16 %v490
        %v1337 = vunpack.c.l.b16 %v491
        %v1338 = vunpack.c.h.b16 %v491
        %v1339 = vunpack.c.l.b16 %v492
        %v1340 = vunpack.c.h.b16 %v492
        %v1341 = vunpack.c.l.b16 %v493
        %v1342 = vunpack.c.h.b16 %v493
        %v1343 = vunpack.c.l.b16 %v494
        %v1344 = vunpack.c.h.b16 %v494
        %v1345 = vunpack.c.l.b16 %v495
        %v1346 = vunpack.c.h.b16 %v495
        %v1347 = vunpack.c.l.b16 %v496
        %v1348 = vunpack.c.h.b16 %v496
        %v1349 = vunpack.c.l.b16 %v497
        %v1350 = vunpack.c.h.b16 %v497
        %v1351 = vunpack.c.l.b16 %v498
        %v1352 = vunpack.c.h.b16 %v498
        %v1353 = vunpack.c.l.b16 %v499
        %v1354 = vunpack.c.h.b16 %v499
        %v1355 = vunpack.c.l.b16 %v500
        %v1356 = vunpack.c.h.b16 %v500
        %v1357 = vunpack.c.l.b16 %v501
        %v1358 = vunpack.c.h.b16 %v501
        %v1359 = vunpack.c.l.b16 %v502
        %v1360 = vunpack.c.h.b16 %v502
        %v1361 = vunpack.c.l.b16 %v503
        %v1362 = vunpack.c.h.b16 %v503
        %v1363 = vunpack.c.l.b16 %v504
        %v1364 = vunpack.c.h.b16 %v504
        %v1365 = vunpack.c.l.b16 %v505
        %v1366 = vunpack.c.h.b16 %v505
        %v1367 = vunpack.c.l.b16 %v506
        %v1368 = vunpack.c.h.b16 %v506
        %v1369 = vunpack.c.l.b16 %v507
        %v1370 = vunpack.c.h.b16 %v507
        %v1371 = vunpack.c.l.b16 %v508
        %v1372 = vunpack.c.h.b16 %v508
        %v1373 = vunpack.c.l.b16 %v509
        %v1374 = vunpack.c.h.b16 %v509
        %v1375 = vunpack.c.l.b16 %v510
        %v1376 = vunpack.c.h.b16 %v510
        %v1377 = vunpack.c.l.b16 %v511
        %v1378 = vunpack.c.h.b16 %v511
        %v1379 = vunpack.c.l.b16 %v512
        %v1380 = vunpack.c.h.b16 %v512
        %v1381 = vunpack.c.l.b16 %v513
        %v1382 = vunpack.c.h.b16 %v513
        %v1383 = vunpack.c.l.b16 %v514
        %v1384 = vunpack.c.h.b16 %v514
        %v1385 = vunpack.c.l.b16 %v515
        %v1386 = vunpack.c.h.b16 %v515
        %v1387 = vunpack.c.l.b16 %v516
        %v1388 = vunpack.c.h.b16 %v516
        %v1389 = vunpack.c.l.b16 %v517
        %v1390 = vunpack.c.h.b16 %v517
        %v1391 = vunpack.c.l.b16 %v518
        %v1392 = vunpack.c.h.b16 %v518
        %v1393 = vunpack.c.l.b16 %v519
        %v1394 = vunpack.c.h.b16 %v519
        %v1395 = vunpack.c.l.b16 %v520
        %v1396 = vunpack.c.h.b16 %v520
        %v1397 = vunpack.c.l.b16 %v521
        %v1398 = vunpack.c.h.b16 %v521
        %v1399 = vunpack.c.l.b16 %v522
        %v1400 = vunpack.c.h.b16 %v522
        %v1401 = vunpack.c.l.b16 %v523
        %v1402 = vunpack.c.h.b16 %v523
        %v1403 = vunpack.c.l.b16 %v524
        %v1404 = vunpack.c.h.b16 %v524
        %v1405 = vunpack.c.l.b16 %v525
        %v1406 = vunpack.c.h.b16 %v525
        %v1407 = vunpack.c.l.b16 %v526
        %v1408 = vunpack.c.h.b16 %v526
        %v1409 = vunpack.c.l.b16 %v527
        %v1410 = vunpack.c.h.b16 %v527
        %v1411 = vunpack.c.l.b16 %v528
        %v1412 = vunpack.c.h.b16 %v528
        %v1413 = vunpack.c.l.b16 %v529
        %v1414 = vunpack.c.h.b16 %v529
        %v1415 = vunpack.c.l.b16 %v530
        %v1416 = vunpack.c.h.b16 %v530
        %v1417 = vunpack.c.l.b16 %v531
        %v1418 = vunpack.c.h.b16 %v531
        %v1419 = vunpack.c.l.b16 %v532
        %v1420 = vunpack.c.h.b16 %v532
        %v1421 = vunpack.c.l.b16 %v533
        %v1422 = vunpack.c.h.b16 %v533
        %v1423 = vunpack.c.l.b16 %v534
        %v1424 = vunpack.c.h.b16 %v534
        %v1425 = vunpack.c.l.b16 %v535
        %v1426 = vunpack.c.h.b16 %v535
        %v1427 = vunpack.c.l.b16 %v536
        %v1428 = vunpack.c.h.b16 %v536
        %v1429 = vunpack.c.l.b16 %v537
        %v1430 = vunpack.c.h.b16 %v537
        %v1431 = vunpack.c.l.b16 %v538
        %v1432 = vunpack.c.h.b16 %v538
        %v1433 = vpack.c.b16 %v863, %v857
        %v1434 = vpack.c.b16 %v864, %v858
        %v1435 = vpack.c.b16 %v865, %v859
        %v1436 = vpack.c.b16 %v866, %v860
        %v1437 = vpack.c.b16 %v867, %v861
        %v1438 = vpack.c.b16 %v868, %v862
        %v1439 = vpack.c.b16 %v875, %v869
        %v1440 = vpack.c.b16 %v876, %v870
        %v1441 = vpack.c.b16 %v877, %v871
        %v1442 = vpack.c.b16 %v878, %v872
        %v1443 = vpack.c.b16 %v879, %v873
        %v1444 = vpack.c.b16 %v880, %v874
        %v1445 = vpack.c.b16 %v887, %v881
        %v1446 = vpack.c.b16 %v888, %v882
        %v1447 = vpack.c.b16 %v889, %v883
        %v1448 = vpack.c.b16 %v890, %v884
        %v1449 = vpack.c.b16 %v891, %v885
        %v1450 = vpack.c.b16 %v892, %v886
        %v1451 = vpack.c.b16 %v899, %v893
        %v1452 = vpack.c.b16 %v900, %v894
        %v1453 = vpack.c.b16 %v901, %v895
        %v1454 = vpack.c.b16 %v902, %v896
        %v1455 = vpack.c.b16 %v903, %v897
        %v1456 = vpack.c.b16 %v904, %v898
        %v1457 = vpack.c.b16 %v911, %v905
        %v1458 = vpack.c.b16 %v912, %v906
        %v1459 = vpack.c.b16 %v913, %v907
        %v1460 = vpack.c.b16 %v914, %v908
        %v1461 = vpack.c.b16 %v915, %v909
        %v1462 = vpack.c.b16 %v916, %v910
        %v1463 = vpack.c.b16 %v923, %v917
        %v1464 = vpack.c.b16 %v924, %v918
        %v1465 = vpack.c.b16 %v925, %v919
        %v1466 = vpack.c.b16 %v926, %v920
        %v1467 = vpack.c.b16 %v927, %v921
        %v1468 = vpack.c.b16 %v928, %v922
        %v1469 = vpack.c.b16 %v935, %v929
        %v1470 = vpack.c.b16 %v936, %v930
        %v1471 = vpack.c.b16 %v937, %v931
        %v1472 = vpack.c.b16 %v938, %v932
        %v1473 = vpack.c.b16 %v939, %v933
        %v1474 = vpack.c.b16 %v940, %v934
        %v1475 = vpack.c.b16 %v947, %v941
        %v1476 = vpack.c.b16 %v948, %v942
        %v1477 = vpack.c.b16 %v949, %v943
        %v1478 = vpack.c.b16 %v950, %v944
        %v1479 = vpack.c.b16 %v951, %v945
        %v1480 = vpack.c.b16 %v952, %v946
        %v1481 = vpack.c.b16 %v959, %v953
        %v1482 = vpack.c.b16 %v960, %v954
        %v1483 = vpack.c.b16 %v961, %v955
        %v1484 = vpack.c.b16 %v962, %v956
        %v1485 = vpack.c.b16 %v963, %v957
        %v1486 = vpack.c.b16 %v964, %v958
        %v1487 = vpack.c.b16 %v971, %v965
        %v1488 = vpack.c.b16 %v972, %v966
        %v1489 = vpack.c.b16 %v973, %v967
        %v1490 = vpack.c.b16 %v974, %v968
        %v1491 = vpack.c.b16 %v975, %v969
        %v1492 = vpack.c.b16 %v976, %v970
        %v1493 = vpack.c.b16 %v983, %v977
        %v1494 = vpack.c.b16 %v984, %v978
        %v1495 = vpack.c.b16 %v985, %v979
        %v1496 = vpack.c.b16 %v986, %v980
        %v1497 = vpack.c.b16 %v987, %v981
        %v1498 = vpack.c.b16 %v988, %v982
        %v1499 = vpack.c.b16 %v995, %v989
        %v1500 = vpack.c.b16 %v996, %v990
        %v1501 = vpack.c.b16 %v997, %v991
        %v1502 = vpack.c.b16 %v998, %v992
        %v1503 = vpack.c.b16 %v999, %v993
        %v1504 = vpack.c.b16 %v1000, %v994
        %v1505 = vpack.c.b16 %v1007, %v1001
        %v1506 = vpack.c.b16 %v1008, %v1002
        %v1507 = vpack.c.b16 %v1009, %v1003
        %v1508 = vpack.c.b16 %v1010, %v1004
        %v1509 = vpack.c.b16 %v1011, %v1005
        %v1510 = vpack.c.b16 %v1012, %v1006
        %v1511 = vpack.c.b16 %v1019, %v1013
        %v1512 = vpack.c.b16 %v1020, %v1014
        %v1513 = vpack.c.b16 %v1021, %v1015
        %v1514 = vpack.c.b16 %v1022, %v1016
        %v1515 = vpack.c.b16 %v1023, %v1017
        %v1516 = vpack.c.b16 %v1024, %v1018
        %v1517 = vpack.c.b16 %v1031, %v1025
        %v1518 = vpack.c.b16 %v1032, %v1026
        %v1519 = vpack.c.b16 %v1033, %v1027
        %v1520 = vpack.c.b16 %v1034, %v1028
        %v1521 = vpack.c.b16 %v1035, %v1029
        %v1522 = vpack.c.b16 %v1036, %v1030
        %v1523 = vpack.c.b16 %v1043, %v1037
        %v1524 = vpack.c.b16 %v1044, %v1038
        %v1525 = vpack.c.b16 %v1045, %v1039
        %v1526 = vpack.c.b16 %v1046, %v1040
        %v1527 = vpack.c.b16 %v1047, %v1041
        %v1528 = vpack.c.b16 %v1048, %v1042
        %v1529 = vpack.c.b16 %v1055, %v1049
        %v1530 = vpack.c.b16 %v1056, %v1050
        %v1531 = vpack.c.b16 %v1057, %v1051
        %v1532 = vpack.c.b16 %v1058, %v1052
        %v1533 = vpack.c.b16 %v1059, %v1053
        %v1534 = vpack.c.b16 %v1060, %v1054
        %v1535 = vpack.c.b16 %v1067, %v1061
        %v1536 = vpack.c.b16 %v1068, %v1062
        %v1537 = vpack.c.b16 %v1069, %v1063
        %v1538 = vpack.c.b16 %v1070, %v1064
        %v1539 = vpack.c.b16 %v1071, %v1065
        %v1540 = vpack.c.b16 %v1072, %v1066
        %v1541 = vpack.c.b16 %v1079, %v1073
        %v1542 = vpack.c.b16 %v1080, %v1074
        %v1543 = vpack.c.b16 %v1081, %v1075
        %v1544 = vpack.c.b16 %v1082, %v1076
        %v1545 = vpack.c.b16 %v1083, %v1077
        %v1546 = vpack.c.b16 %v1084, %v1078
        %v1547 = vpack.c.b16 %v1091, %v1085
        %v1548 = vpack.c.b16 %v1092, %v1086
        %v1549 = vpack.c.b16 %v1093, %v1087
        %v1550 = vpack.c.b16 %v1094, %v1088
        %v1551 = vpack.c.b16 %v1095, %v1089
        %v1552 = vpack.c.b16 %v1096, %v1090
        %v1553 = vpack.c.b16 %v1103, %v1097
        %v1554 = vpack.c.b16 %v1104, %v1098
        %v1555 = vpack.c.b16 %v1105, %v1099
        %v1556 = vpack.c.b16 %v1106, %v1100
        %v1557 = vpack.c.b16 %v1107, %v1101
        %v1558 = vpack.c.b16 %v1108, %v1102
        %v1559 = vpack.c.b16 %v1115, %v1109
        %v1560 = vpack.c.b16 %v1116, %v1110
        %v1561 = vpack.c.b16 %v1117, %v1111
        %v1562 = vpack.c.b16 %v1118, %v1112
        %v1563 = vpack.c.b16 %v1119, %v1113
        %v1564 = vpack.c.b16 %v1120, %v1114
        %v1565 = vpack.c.b16 %v1127, %v1121
        %v1566 = vpack.c.b16 %v1128, %v1122
        %v1567 = vpack.c.b16 %v1129, %v1123
        %v1568 = vpack.c.b16 %v1130, %v1124
        %v1569 = vpack.c.b16 %v1131, %v1125
        %v1570 = vpack.c.b16 %v1132, %v1126
        %v1571 = vpack.c.b16 %v1139, %v1133
        %v1572 = vpack.c.b16 %v1140, %v1134
        %v1573 = vpack.c.b16 %v1141, %v1135
        %v1574 = vpack.c.b16 %v1142, %v1136
        %v1575 = vpack.c.b16 %v1143, %v1137
        %v1576 = vpack.c.b16 %v1144, %v1138
        %v1577 = vpack.c.b16 %v1151, %v1145
        %v1578 = vpack.c.b16 %v1152, %v1146
        %v1579 = vpack.c.b16 %v1153, %v1147
        %v1580 = vpack.c.b16 %v1154, %v1148
        %v1581 = vpack.c.b16 %v1155, %v1149
        %v1582 = vpack.c.b16 %v1156, %v1150
        %v1583 = vpack.c.b16 %v1163, %v1157
        %v1584 = vpack.c.b16 %v1164, %v1158
        %v1585 = vpack.c.b16 %v1165, %v1159
        %v1586 = vpack.c.b16 %v1166, %v1160
        %v1587 = vpack.c.b16 %v1167, %v1161
        %v1588 = vpack.c.b16 %v1168, %v1162
        %v1589 = vpack.c.b16 %v1175, %v1169
        %v1590 = vpack.c.b16 %v1176, %v1170
        %v1591 = vpack.c.b16 %v1177, %v1171
        %v1592 = vpack.c.b16 %v1178, %v1172
        %v1593 = vpack.c.b16 %v1179, %v1173
        %v1594 = vpack.c.b16 %v1180, %v1174
        %v1595 = vpack.c.b16 %v1187, %v1181
        %v1596 = vpack.c.b16 %v1188, %v1182
        %v1597 = vpack.c.b16 %v1189, %v1183
        %v1598 = vpack.c.b16 %v1190, %v1184
        %v1599 = vpack.c.b16 %v1191, %v1185
        %v1600 = vpack.c.b16 %v1192, %v1186
        %v1601 = vpack.c.b16 %v1199, %v1193
        %v1602 = vpack.c.b16 %v1200, %v1194
        %v1603 = vpack.c.b16 %v1201, %v1195
        %v1604 = vpack.c.b16 %v1202, %v1196
        %v1605 = vpack.c.b16 %v1203, %v1197
        %v1606 = vpack.c.b16 %v1204, %v1198
        %v1607 = vpack.c.b16 %v1211, %v1205
        %v1608 = vpack.c.b16 %v1212, %v1206
        %v1609 = vpack.c.b16 %v1213, %v1207
        %v1610 = vpack.c.b16 %v1214, %v1208
        %v1611 = vpack.c.b16 %v1215, %v1209
        %v1612 = vpack.c.b16 %v1216, %v1210
        %v1613 = vpack.c.b16 %v1223, %v1217
        %v1614 = vpack.c.b16 %v1224, %v1218
        %v1615 = vpack.c.b16 %v1225, %v1219
        %v1616 = vpack.c.b16 %v1226, %v1220
        %v1617 = vpack.c.b16 %v1227, %v1221
        %v1618 = vpack.c.b16 %v1228, %v1222
        %v1619 = vpack.c.b16 %v1235, %v1229
        %v1620 = vpack.c.b16 %v1236, %v1230
        %v1621 = vpack.c.b16 %v1237, %v1231
        %v1622 = vpack.c.b16 %v1238, %v1232
        %v1623 = vpack.c.b16 %v1239, %v1233
        %v1624 = vpack.c.b16 %v1240, %v1234
        %v1625 = vpack.c.b16 %v1247, %v1241
        %v1626 = vpack.c.b16 %v1248, %v1242
        %v1627 = vpack.c.b16 %v1249, %v1243
        %v1628 = vpack.c.b16 %v1250, %v1244
        %v1629 = vpack.c.b16 %v1251, %v1245
        %v1630 = vpack.c.b16 %v1252, %v1246
        %v1631 = vpack.c.b16 %v1259, %v1253
        %v1632 = vpack.c.b16 %v1260, %v1254
        %v1633 = vpack.c.b16 %v1261, %v1255
        %v1634 = vpack.c.b16 %v1262, %v1256
        %v1635 = vpack.c.b16 %v1263, %v1257
        %v1636 = vpack.c.b16 %v1264, %v1258
        %v1637 = vpack.c.b16 %v1271, %v1265
        %v1638 = vpack.c.b16 %v1272, %v1266
        %v1639 = vpack.c.b16 %v1273, %v1267
        %v1640 = vpack.c.b16 %v1274, %v1268
        %v1641 = vpack.c.b16 %v1275, %v1269
        %v1642 = vpack.c.b16 %v1276, %v1270
        %v1643 = vpack.c.b16 %v1283, %v1277
        %v1644 = vpack.c.b16 %v1284, %v1278
        %v1645 = vpack.c.b16 %v1285, %v1279
        %v1646 = vpack.c.b16 %v1286, %v1280
        %v1647 = vpack.c.b16 %v1287, %v1281
        %v1648 = vpack.c.b16 %v1288, %v1282
        %v1649 = vpack.c.b16 %v1295, %v1289
        %v1650 = vpack.c.b16 %v1296, %v1290
        %v1651 = vpack.c.b16 %v1297, %v1291
        %v1652 = vpack.c.b16 %v1298, %v1292
        %v1653 = vpack.c.b16 %v1299, %v1293
        %v1654 = vpack.c.b16 %v1300, %v1294
        %v1655 = vpack.c.b16 %v1307, %v1301
        %v1656 = vpack.c.b16 %v1308, %v1302
        %v1657 = vpack.c.b16 %v1309, %v1303
        %v1658 = vpack.c.b16 %v1310, %v1304
        %v1659 = vpack.c.b16 %v1311, %v1305
        %v1660 = vpack.c.b16 %v1312, %v1306
        %v1661 = vpack.c.b16 %v1319, %v1313
        %v1662 = vpack.c.b16 %v1320, %v1314
        %v1663 = vpack.c.b16 %v1321, %v1315
        %v1664 = vpack.c.b16 %v1322, %v1316
        %v1665 = vpack.c.b16 %v1323, %v1317
        %v1666 = vpack.c.b16 %v1324, %v1318
        %v1667 = vpack.c.b16 %v1331, %v1325
        %v1668 = vpack.c.b16 %v1332, %v1326
        %v1669 = vpack.c.b16 %v1333, %v1327
        %v1670 = vpack.c.b16 %v1334, %v1328
        %v1671 = vpack.c.b16 %v1335, %v1329
        %v1672 = vpack.c.b16 %v1336, %v1330
        %v1673 = vpack.c.b16 %v1343, %v1337
        %v1674 = vpack.c.b16 %v1344, %v1338
        %v1675 = vpack.c.b16 %v1345, %v1339
        %v1676 = vpack.c.b16 %v1346, %v1340
        %v1677 = vpack.c.b16 %v1347, %v1341
        %v1678 = vpack.c.b16 %v1348, %v1342
        %v1679 = vpack.c.b16 %v1355, %v1349
        %v1680 = vpack.c.b16 %v1356, %v1350
        %v1681 = vpack.c.b16 %v1357, %v1351
        %v1682 = vpack.c.b16 %v1358, %v1352
        %v1683 = vpack.c.b16 %v1359, %v1353
        %v1684 = vpack.c.b16 %v1360, %v1354
        %v1685 = vpack.c.b16 %v1367, %v1361
        %v1686 = vpack.c.b16 %v1368, %v1362
        %v1687 = vpack.c.b16 %v1369, %v1363
        %v1688 = vpack.c.b16 %v1370, %v1364
        %v1689 = vpack.c.b16 %v1371, %v1365
        %v1690 = vpack.c.b16 %v1372, %v1366
        %v1691 = vpack.c.b16 %v1379, %v1373
        %v1692 = vpack.c.b16 %v1380, %v1374
        %v1693 = vpack.c.b16 %v1381, %v1375
        %v1694 = vpack.c.b16 %v1382, %v1376
        %v1695 = vpack.c.b16 %v1383, %v1377
        %v1696 = vpack.c.b16 %v1384, %v1378
        %v1697 = vpack.c.b16 %v1391, %v1385
        %v1698 = vpack.c.b16 %v1392, %v1386
        %v1699 = vpack.c.b16 %v1393, %v1387
        %v1700 = vpack.c.b16 %v1394, %v1388
        %v1701 = vpack.c.b16 %v1395, %v1389
        %v1702 = vpack.c.b16 %v1396, %v1390
        %v1703 = vpack.c.b16 %v1403, %v1397
        %v1704 = vpack.c.b16 %v1404, %v1398
        %v1705 = vpack.c.b16 %v1405, %v1399
        %v1706 = vpack.c.b16 %v1406, %v1400
        %v1707 = vpack.c.b16 %v1407, %v1401
        %v1708 = vpack.c.b16 %v1408, %v1402
        %v1709 = vpack.c.b16 %v1415, %v1409
        %v1710 = vpack.c.b16 %v1416, %v1410
        %v1711 = vpack.c.b16 %v1417, %v1411
        %v1712 = vpack.c.b16 %v1418, %v1412
        %v1713 = vpack.c.b16 %v1419, %v1413
        %v1714 = vpack.c.b16 %v1420, %v1414
        %v1715 = vpack.c.b16 %v1427, %v1421
        %v1716 = vpack.c.b16 %v1428, %v1422
        %v1717 = vpack.c.b16 %v1429, %v1423
        %v1718 = vpack.c.b16 %v1430, %v1424
        %v1719 = vpack.c.b16 %v1431, %v1425
        %v1720 = vpack.c.b16 %v1432, %v1426
        %2009 = vmatprep.subr.bf16.mxu0 %v1434
        %2010 = vmatpush1.bf16.msra.mxu0 %v1433
        %2011 = vmatprep.subr.bf16.mxu0 %v1440
        %2012 = vmatpush1.bf16.msra.mxu0 %v1439
        %2013 = vmatprep.subr.bf16.mxu0 %v1446
        %2014 = vmatpush1.bf16.msra.mxu0 %v1445
        %2015 = vmatprep.subr.bf16.mxu0 %v1452
        %2016 = vmatpush1.bf16.msra.mxu0 %v1451
        %2017 = vmatprep.subr.bf16.mxu0 %v1458
        %2018 = vmatpush1.bf16.msra.mxu0 %v1457
        %2019 = vmatprep.subr.bf16.mxu0 %v1464
        %2020 = vmatpush1.bf16.msra.mxu0 %v1463
        %2021 = vmatprep.subr.bf16.mxu0 %v1470
        %2022 = vmatpush1.bf16.msra.mxu0 %v1469
        %2023 = vmatprep.subr.bf16.mxu0 %v1476
        %2024 = vmatpush1.bf16.msra.mxu0 %v1475
        %2025 = vmatprep.subr.bf16.mxu0 %v1482
        %2026 = vmatpush1.bf16.msra.mxu0 %v1481
        %2027 = vmatprep.subr.bf16.mxu0 %v1488
        %2028 = vmatpush1.bf16.msra.mxu0 %v1487
        %2029 = vmatprep.subr.bf16.mxu0 %v1494
        %2030 = vmatpush1.bf16.msra.mxu0 %v1493
        %2031 = vmatprep.subr.bf16.mxu0 %v1500
        %2032 = vmatpush1.bf16.msra.mxu0 %v1499
        %2033 = vmatprep.subr.bf16.mxu0 %v1506
        %2034 = vmatpush1.bf16.msra.mxu0 %v1505
        %2035 = vmatprep.subr.bf16.mxu0 %v1512
        %2036 = vmatpush1.bf16.msra.mxu0 %v1511
        %2037 = vmatprep.subr.bf16.mxu0 %v1518
        %2038 = vmatpush1.bf16.msra.mxu0 %v1517
        %2039 = vmatprep.subr.bf16.mxu0 %v1524
        %2040 = vmatpush1.bf16.msra.mxu0 %v1523
        %2041 = vmatprep.mubr.bf16.mxu0 %v558
        %2042 = vmatmul.mubr.bf16.gmra.mrb[0].mxu0 %v557
        %v2043 = vpop.f32.mrb[0].mxu0
        %v2044 = vadd.f32 %v233, %v2043
        %v2045 = vpop.f32.mrb[0].mxu0
        %v2046 = vadd.f32 %v234, %v2045
        %v2047 = vpop.f32.mrb[0].mxu0
        %v2048 = vadd.f32 %v239, %v2047
        %v2049 = vpop.f32.mrb[0].mxu0
        %v2050 = vadd.f32 %v240, %v2049
        %2051 = vdwg.mxu0
        %2052 = vmatprep.subr.bf16.mxu0 %v1530
        %2053 = vmatpush1.bf16.msra.mxu0 %v1529
        %2054 = vmatprep.subr.bf16.mxu0 %v1536
        %2055 = vmatpush1.bf16.msra.mxu0 %v1535
        %2056 = vmatprep.subr.bf16.mxu0 %v1542
        %2057 = vmatpush1.bf16.msra.mxu0 %v1541
        %2058 = vmatprep.subr.bf16.mxu0 %v1548
        %2059 = vmatpush1.bf16.msra.mxu0 %v1547
        %2060 = vmatprep.subr.bf16.mxu0 %v1554
        %2061 = vmatpush1.bf16.msra.mxu0 %v1553
        %2062 = vmatprep.subr.bf16.mxu0 %v1560
        %2063 = vmatpush1.bf16.msra.mxu0 %v1559
        %2064 = vmatprep.subr.bf16.mxu0 %v1566
        %2065 = vmatpush1.bf16.msra.mxu0 %v1565
        %2066 = vmatprep.subr.bf16.mxu0 %v1572
        %2067 = vmatpush1.bf16.msra.mxu0 %v1571
        %2068 = vmatprep.subr.bf16.mxu0 %v1578
        %2069 = vmatpush1.bf16.msra.mxu0 %v1577
        %2070 = vmatprep.subr.bf16.mxu0 %v1584
        %2071 = vmatpush1.bf16.msra.mxu0 %v1583
        %2072 = vmatprep.subr.bf16.mxu0 %v1590
        %2073 = vmatpush1.bf16.msra.mxu0 %v1589
        %2074 = vmatprep.subr.bf16.mxu0 %v1596
        %2075 = vmatpush1.bf16.msra.mxu0 %v1595
        %2076 = vmatprep.subr.bf16.mxu0 %v1602
        %2077 = vmatpush1.bf16.msra.mxu0 %v1601
        %2078 = vmatprep.subr.bf16.mxu0 %v1608
        %2079 = vmatpush1.bf16.msra.mxu0 %v1607
        %2080 = vmatprep.subr.bf16.mxu0 %v1614
        %2081 = vmatpush1.bf16.msra.mxu0 %v1613
        %2082 = vmatprep.subr.bf16.mxu0 %v1620
        %2083 = vmatpush1.bf16.msra.mxu0 %v1619
        %2084 = vmatprep.mubr.bf16.mxu0 %v560
        %2085 = vmatmul.mubr.bf16.gmra.mrb[0].mxu0 %v559
        %v2086 = vpop.f32.mrb[0].mxu0
        %v2087 = vadd.f32 %v2044, %v2086
        %v2088 = vpop.f32.mrb[0].mxu0
        %v2089 = vadd.f32 %v2046, %v2088
        %v2090 = vpop.f32.mrb[0].mxu0
        %v2091 = vadd.f32 %v2048, %v2090
        %v2092 = vpop.f32.mrb[0].mxu0
        %v2093 = vadd.f32 %v2050, %v2092
        %2094 = vdwg.mxu0
        %2095 = vmatprep.subr.bf16.mxu0 %v1626
        %2096 = vmatpush1.bf16.msra.mxu0 %v1625
        %2097 = vmatprep.subr.bf16.mxu0 %v1632
        %2098 = vmatpush1.bf16.msra.mxu0 %v1631
        %2099 = vmatprep.subr.bf16.mxu0 %v1638
        %2100 = vmatpush1.bf16.msra.mxu0 %v1637
        %2101 = vmatprep.subr.bf16.mxu0 %v1644
        %2102 = vmatpush1.bf16.msra.mxu0 %v1643
        %2103 = vmatprep.subr.bf16.mxu0 %v1650
        %2104 = vmatpush1.bf16.msra.mxu0 %v1649
        %2105 = vmatprep.subr.bf16.mxu0 %v1656
        %2106 = vmatpush1.bf16.msra.mxu0 %v1655
        %2107 = vmatprep.subr.bf16.mxu0 %v1662
        %2108 = vmatpush1.bf16.msra.mxu0 %v1661
        %2109 = vmatprep.subr.bf16.mxu0 %v1668
        %2110 = vmatpush1.bf16.msra.mxu0 %v1667
        %2111 = vmatprep.subr.bf16.mxu0 %v1674
        %2112 = vmatpush1.bf16.msra.mxu0 %v1673
        %2113 = vmatprep.subr.bf16.mxu0 %v1680
        %2114 = vmatpush1.bf16.msra.mxu0 %v1679
        %2115 = vmatprep.subr.bf16.mxu0 %v1686
        %2116 = vmatpush1.bf16.msra.mxu0 %v1685
        %2117 = vmatprep.subr.bf16.mxu0 %v1692
        %2118 = vmatpush1.bf16.msra.mxu0 %v1691
        %2119 = vmatprep.subr.bf16.mxu0 %v1698
        %2120 = vmatpush1.bf16.msra.mxu0 %v1697
        %2121 = vmatprep.subr.bf16.mxu0 %v1704
        %2122 = vmatpush1.bf16.msra.mxu0 %v1703
        %2123 = vmatprep.subr.bf16.mxu0 %v1710
        %2124 = vmatpush1.bf16.msra.mxu0 %v1709
        %2125 = vmatprep.subr.bf16.mxu0 %v1716
        %2126 = vmatpush1.bf16.msra.mxu0 %v1715
        %2127 = vmatprep.mubr.bf16.mxu0 %v562
        %2128 = vmatmul.mubr.bf16.gmra.mrb[0].mxu0 %v561
        %v2129 = vpop.f32.mrb[0].mxu0
        %v2130 = vadd.f32 %v2087, %v2129
        %v2131 = vpop.f32.mrb[0].mxu0
        %v2132 = vadd.f32 %v2089, %v2131
        %v2133 = vpop.f32.mrb[0].mxu0
        %v2134 = vadd.f32 %v2091, %v2133
        %v2135 = vpop.f32.mrb[0].mxu0
        %v2136 = vadd.f32 %v2093, %v2135
        %2137 = vdwg.mxu0
        %2138 = vmatprep.subr.bf16.mxu0 %v1436
        %2139 = vmatpush1.bf16.msra.mxu0 %v1435
        %2140 = vmatprep.subr.bf16.mxu0 %v1442
        %2141 = vmatpush1.bf16.msra.mxu0 %v1441
        %2142 = vmatprep.subr.bf16.mxu0 %v1448
        %2143 = vmatpush1.bf16.msra.mxu0 %v1447
        %2144 = vmatprep.subr.bf16.mxu0 %v1454
        %2145 = vmatpush1.bf16.msra.mxu0 %v1453
        %2146 = vmatprep.subr.bf16.mxu0 %v1460
        %2147 = vmatpush1.bf16.msra.mxu0 %v1459
        %2148 = vmatprep.subr.bf16.mxu0 %v1466
        %2149 = vmatpush1.bf16.msra.mxu0 %v1465
        %2150 = vmatprep.subr.bf16.mxu0 %v1472
        %2151 = vmatpush1.bf16.msra.mxu0 %v1471
        %2152 = vmatprep.subr.bf16.mxu0 %v1478
        %2153 = vmatpush1.bf16.msra.mxu0 %v1477
        %2154 = vmatprep.subr.bf16.mxu0 %v1484
        %2155 = vmatpush1.bf16.msra.mxu0 %v1483
        %2156 = vmatprep.subr.bf16.mxu0 %v1490
        %2157 = vmatpush1.bf16.msra.mxu0 %v1489
        %2158 = vmatprep.subr.bf16.mxu0 %v1496
        %2159 = vmatpush1.bf16.msra.mxu0 %v1495
        %2160 = vmatprep.subr.bf16.mxu0 %v1502
        %2161 = vmatpush1.bf16.msra.mxu0 %v1501
        %2162 = vmatprep.subr.bf16.mxu0 %v1508
        %2163 = vmatpush1.bf16.msra.mxu0 %v1507
        %2164 = vmatprep.subr.bf16.mxu0 %v1514
        %2165 = vmatpush1.bf16.msra.mxu0 %v1513
        %2166 = vmatprep.subr.bf16.mxu0 %v1520
        %2167 = vmatpush1.bf16.msra.mxu0 %v1519
        %2168 = vmatprep.subr.bf16.mxu0 %v1526
        %2169 = vmatpush1.bf16.msra.mxu0 %v1525
        %2170 = vmatprep.mubr.bf16.mxu0 %v558
        %2171 = vmatmul.mubr.bf16.gmra.mrb[0].mxu0 %v557
        %v2172 = vpop.f32.mrb[0].mxu0
        %v2173 = vadd.f32 %v235, %v2172
        %v2174 = vpop.f32.mrb[0].mxu0
        %v2175 = vadd.f32 %v236, %v2174
        %v2176 = vpop.f32.mrb[0].mxu0
        %v2177 = vadd.f32 %v241, %v2176
        %v2178 = vpop.f32.mrb[0].mxu0
        %v2179 = vadd.f32 %v242, %v2178
        %2180 = vdwg.mxu0
        %2181 = vmatprep.subr.bf16.mxu0 %v1532
        %2182 = vmatpush1.bf16.msra.mxu0 %v1531
        %2183 = vmatprep.subr.bf16.mxu0 %v1538
        %2184 = vmatpush1.bf16.msra.mxu0 %v1537
        %2185 = vmatprep.subr.bf16.mxu0 %v1544
        %2186 = vmatpush1.bf16.msra.mxu0 %v1543
        %2187 = vmatprep.subr.bf16.mxu0 %v1550
        %2188 = vmatpush1.bf16.msra.mxu0 %v1549
        %2189 = vmatprep.subr.bf16.mxu0 %v1556
        %2190 = vmatpush1.bf16.msra.mxu0 %v1555
        %2191 = vmatprep.subr.bf16.mxu0 %v1562
        %2192 = vmatpush1.bf16.msra.mxu0 %v1561
        %2193 = vmatprep.subr.bf16.mxu0 %v1568
        %2194 = vmatpush1.bf16.msra.mxu0 %v1567
        %2195 = vmatprep.subr.bf16.mxu0 %v1574
        %2196 = vmatpush1.bf16.msra.mxu0 %v1573
        %2197 = vmatprep.subr.bf16.mxu0 %v1580
        %2198 = vmatpush1.bf16.msra.mxu0 %v1579
        %2199 = vmatprep.subr.bf16.mxu0 %v1586
        %2200 = vmatpush1.bf16.msra.mxu0 %v1585
        %2201 = vmatprep.subr.bf16.mxu0 %v1592
        %2202 = vmatpush1.bf16.msra.mxu0 %v1591
        %2203 = vmatprep.subr.bf16.mxu0 %v1598
        %2204 = vmatpush1.bf16.msra.mxu0 %v1597
        %2205 = vmatprep.subr.bf16.mxu0 %v1604
        %2206 = vmatpush1.bf16.msra.mxu0 %v1603
        %2207 = vmatprep.subr.bf16.mxu0 %v1610
        %2208 = vmatpush1.bf16.msra.mxu0 %v1609
        %2209 = vmatprep.subr.bf16.mxu0 %v1616
        %2210 = vmatpush1.bf16.msra.mxu0 %v1615
        %2211 = vmatprep.subr.bf16.mxu0 %v1622
        %2212 = vmatpush1.bf16.msra.mxu0 %v1621
        %2213 = vmatprep.mubr.bf16.mxu0 %v560
        %2214 = vmatmul.mubr.bf16.gmra.mrb[0].mxu0 %v559
        %v2215 = vpop.f32.mrb[0].mxu0
        %v2216 = vadd.f32 %v2173, %v2215
        %v2217 = vpop.f32.mrb[0].mxu0
        %v2218 = vadd.f32 %v2175, %v2217
        %v2219 = vpop.f32.mrb[0].mxu0
        %v2220 = vadd.f32 %v2177, %v2219
        %v2221 = vpop.f32.mrb[0].mxu0
        %v2222 = vadd.f32 %v2179, %v2221
        %2223 = vdwg.mxu0
        %2224 = vmatprep.subr.bf16.mxu0 %v1628
        %2225 = vmatpush1.bf16.msra.mxu0 %v1627
        %2226 = vmatprep.subr.bf16.mxu0 %v1634
        %2227 = vmatpush1.bf16.msra.mxu0 %v1633
        %2228 = vmatprep.subr.bf16.mxu0 %v1640
        %2229 = vmatpush1.bf16.msra.mxu0 %v1639
        %2230 = vmatprep.subr.bf16.mxu0 %v1646
        %2231 = vmatpush1.bf16.msra.mxu0 %v1645
        %2232 = vmatprep.subr.bf16.mxu0 %v1652
        %2233 = vmatpush1.bf16.msra.mxu0 %v1651
        %2234 = vmatprep.subr.bf16.mxu0 %v1658
        %2235 = vmatpush1.bf16.msra.mxu0 %v1657
        %2236 = vmatprep.subr.bf16.mxu0 %v1664
        %2237 = vmatpush1.bf16.msra.mxu0 %v1663
        %2238 = vmatprep.subr.bf16.mxu0 %v1670
        %2239 = vmatpush1.bf16.msra.mxu0 %v1669
        %2240 = vmatprep.subr.bf16.mxu0 %v1676
        %2241 = vmatpush1.bf16.msra.mxu0 %v1675
        %2242 = vmatprep.subr.bf16.mxu0 %v1682
        %2243 = vmatpush1.bf16.msra.mxu0 %v1681
        %2244 = vmatprep.subr.bf16.mxu0 %v1688
        %2245 = vmatpush1.bf16.msra.mxu0 %v1687
        %2246 = vmatprep.subr.bf16.mxu0 %v1694
        %2247 = vmatpush1.bf16.msra.mxu0 %v1693
        %2248 = vmatprep.subr.bf16.mxu0 %v1700
        %2249 = vmatpush1.bf16.msra.mxu0 %v1699
        %2250 = vmatprep.subr.bf16.mxu0 %v1706
        %2251 = vmatpush1.bf16.msra.mxu0 %v1705
        %2252 = vmatprep.subr.bf16.mxu0 %v1712
        %2253 = vmatpush1.bf16.msra.mxu0 %v1711
        %2254 = vmatprep.subr.bf16.mxu0 %v1718
        %2255 = vmatpush1.bf16.msra.mxu0 %v1717
        %2256 = vmatprep.mubr.bf16.mxu0 %v562
        %2257 = vmatmul.mubr.bf16.gmra.mrb[0].mxu0 %v561
        %v2258 = vpop.f32.mrb[0].mxu0
        %v2259 = vadd.f32 %v2216, %v2258
        %v2260 = vpop.f32.mrb[0].mxu0
        %v2261 = vadd.f32 %v2218, %v2260
        %v2262 = vpop.f32.mrb[0].mxu0
        %v2263 = vadd.f32 %v2220, %v2262
        %v2264 = vpop.f32.mrb[0].mxu0
        %v2265 = vadd.f32 %v2222, %v2264
        %2266 = vdwg.mxu0
        %2267 = vmatprep.subr.bf16.mxu0 %v1438
        %2268 = vmatpush1.bf16.msra.mxu0 %v1437
        %2269 = vmatprep.subr.bf16.mxu0 %v1444
        %2270 = vmatpush1.bf16.msra.mxu0 %v1443
        %2271 = vmatprep.subr.bf16.mxu0 %v1450
        %2272 = vmatpush1.bf16.msra.mxu0 %v1449
        %2273 = vmatprep.subr.bf16.mxu0 %v1456
        %2274 = vmatpush1.bf16.msra.mxu0 %v1455
        %2275 = vmatprep.subr.bf16.mxu0 %v1462
        %2276 = vmatpush1.bf16.msra.mxu0 %v1461
        %2277 = vmatprep.subr.bf16.mxu0 %v1468
        %2278 = vmatpush1.bf16.msra.mxu0 %v1467
        %2279 = vmatprep.subr.bf16.mxu0 %v1474
        %2280 = vmatpush1.bf16.msra.mxu0 %v1473
        %2281 = vmatprep.subr.bf16.mxu0 %v1480
        %2282 = vmatpush1.bf16.msra.mxu0 %v1479
        %2283 = vmatprep.subr.bf16.mxu0 %v1486
        %2284 = vmatpush1.bf16.msra.mxu0 %v1485
        %2285 = vmatprep.subr.bf16.mxu0 %v1492
        %2286 = vmatpush1.bf16.msra.mxu0 %v1491
        %2287 = vmatprep.subr.bf16.mxu0 %v1498
        %2288 = vmatpush1.bf16.msra.mxu0 %v1497
        %2289 = vmatprep.subr.bf16.mxu0 %v1504
        %2290 = vmatpush1.bf16.msra.mxu0 %v1503
        %2291 = vmatprep.subr.bf16.mxu0 %v1510
        %2292 = vmatpush1.bf16.msra.mxu0 %v1509
        %2293 = vmatprep.subr.bf16.mxu0 %v1516
        %2294 = vmatpush1.bf16.msra.mxu0 %v1515
        %2295 = vmatprep.subr.bf16.mxu0 %v1522
        %2296 = vmatpush1.bf16.msra.mxu0 %v1521
        %2297 = vmatprep.subr.bf16.mxu0 %v1528
        %2298 = vmatpush1.bf16.msra.mxu0 %v1527
        %2299 = vmatprep.mubr.bf16.mxu0 %v558
        %2300 = vmatmul.mubr.bf16.gmra.mrb[0].mxu0 %v557
        %v2301 = vpop.f32.mrb[0].mxu0
        %v2302 = vadd.f32 %v237, %v2301
        %v2303 = vpop.f32.mrb[0].mxu0
        %v2304 = vadd.f32 %v238, %v2303
        %v2305 = vpop.f32.mrb[0].mxu0
        %v2306 = vadd.f32 %v243, %v2305
        %v2307 = vpop.f32.mrb[0].mxu0
        %v2308 = vadd.f32 %v244, %v2307
        %2309 = vdwg.mxu0
        %2310 = vmatprep.subr.bf16.mxu0 %v1534
        %2311 = vmatpush1.bf16.msra.mxu0 %v1533
        %2312 = vmatprep.subr.bf16.mxu0 %v1540
        %2313 = vmatpush1.bf16.msra.mxu0 %v1539
        %2314 = vmatprep.subr.bf16.mxu0 %v1546
        %2315 = vmatpush1.bf16.msra.mxu0 %v1545
        %2316 = vmatprep.subr.bf16.mxu0 %v1552
        %2317 = vmatpush1.bf16.msra.mxu0 %v1551
        %2318 = vmatprep.subr.bf16.mxu0 %v1558
        %2319 = vmatpush1.bf16.msra.mxu0 %v1557
        %2320 = vmatprep.subr.bf16.mxu0 %v1564
        %2321 = vmatpush1.bf16.msra.mxu0 %v1563
        %2322 = vmatprep.subr.bf16.mxu0 %v1570
        %2323 = vmatpush1.bf16.msra.mxu0 %v1569
        %2324 = vmatprep.subr.bf16.mxu0 %v1576
        %2325 = vmatpush1.bf16.msra.mxu0 %v1575
        %2326 = vmatprep.subr.bf16.mxu0 %v1582
        %2327 = vmatpush1.bf16.msra.mxu0 %v1581
        %2328 = vmatprep.subr.bf16.mxu0 %v1588
        %2329 = vmatpush1.bf16.msra.mxu0 %v1587
        %2330 = vmatprep.subr.bf16.mxu0 %v1594
        %2331 = vmatpush1.bf16.msra.mxu0 %v1593
        %2332 = vmatprep.subr.bf16.mxu0 %v1600
        %2333 = vmatpush1.bf16.msra.mxu0 %v1599
        %2334 = vmatprep.subr.bf16.mxu0 %v1606
        %2335 = vmatpush1.bf16.msra.mxu0 %v1605
        %2336 = vmatprep.subr.bf16.mxu0 %v1612
        %2337 = vmatpush1.bf16.msra.mxu0 %v1611
        %2338 = vmatprep.subr.bf16.mxu0 %v1618
        %2339 = vmatpush1.bf16.msra.mxu0 %v1617
        %2340 = vmatprep.subr.bf16.mxu0 %v1624
        %2341 = vmatpush1.bf16.msra.mxu0 %v1623
        %2342 = vmatprep.mubr.bf16.mxu0 %v560
        %2343 = vmatmul.mubr.bf16.gmra.mrb[0].mxu0 %v559
        %v2344 = vpop.f32.mrb[0].mxu0
        %v2345 = vadd.f32 %v2302, %v2344
        %v2346 = vpop.f32.mrb[0].mxu0
        %v2347 = vadd.f32 %v2304, %v2346
        %v2348 = vpop.f32.mrb[0].mxu0
        %v2349 = vadd.f32 %v2306, %v2348
        %v2350 = vpop.f32.mrb[0].mxu0
        %v2351 = vadd.f32 %v2308, %v2350
        %2352 = vdwg.mxu0
        %2353 = vmatprep.subr.bf16.mxu0 %v1630
        %2354 = vmatpush1.bf16.msra.mxu0 %v1629
        %2355 = vmatprep.subr.bf16.mxu0 %v1636
        %2356 = vmatpush1.bf16.msra.mxu0 %v1635
        %2357 = vmatprep.subr.bf16.mxu0 %v1642
        %2358 = vmatpush1.bf16.msra.mxu0 %v1641
        %2359 = vmatprep.subr.bf16.mxu0 %v1648
        %2360 = vmatpush1.bf16.msra.mxu0 %v1647
        %2361 = vmatprep.subr.bf16.mxu0 %v1654
        %2362 = vmatpush1.bf16.msra.mxu0 %v1653
        %2363 = vmatprep.subr.bf16.mxu0 %v1660
        %2364 = vmatpush1.bf16.msra.mxu0 %v1659
        %2365 = vmatprep.subr.bf16.mxu0 %v1666
        %2366 = vmatpush1.bf16.msra.mxu0 %v1665
        %2367 = vmatprep.subr.bf16.mxu0 %v1672
        %2368 = vmatpush1.bf16.msra.mxu0 %v1671
        %2369 = vmatprep.subr.bf16.mxu0 %v1678
        %2370 = vmatpush1.bf16.msra.mxu0 %v1677
        %2371 = vmatprep.subr.bf16.mxu0 %v1684
        %2372 = vmatpush1.bf16.msra.mxu0 %v1683
        %2373 = vmatprep.subr.bf16.mxu0 %v1690
        %2374 = vmatpush1.bf16.msra.mxu0 %v1689
        %2375 = vmatprep.subr.bf16.mxu0 %v1696
        %2376 = vmatpush1.bf16.msra.mxu0 %v1695
        %2377 = vmatprep.subr.bf16.mxu0 %v1702
        %2378 = vmatpush1.bf16.msra.mxu0 %v1701
        %2379 = vmatprep.subr.bf16.mxu0 %v1708
        %2380 = vmatpush1.bf16.msra.mxu0 %v1707
        %2381 = vmatprep.subr.bf16.mxu0 %v1714
        %2382 = vmatpush1.bf16.msra.mxu0 %v1713
        %2383 = vmatprep.subr.bf16.mxu0 %v1720
        %2384 = vmatpush1.bf16.msra.mxu0 %v1719
        %2385 = vmatprep.mubr.bf16.mxu0 %v562
        %2386 = vmatmul.mubr.bf16.gmra.mrb[0].mxu0 %v561
        %v2387 = vpop.f32.mrb[0].mxu0
        %v2388 = vadd.f32 %v2345, %v2387
        %v2389 = vpop.f32.mrb[0].mxu0
        %v2390 = vadd.f32 %v2347, %v2389
        %v2391 = vpop.f32.mrb[0].mxu0
        %v2392 = vadd.f32 %v2349, %v2391
        %v2393 = vpop.f32.mrb[0].mxu0
        %v2394 = vadd.f32 %v2351, %v2393
        %2395 = vdwg.mxu0
        %2396 = vst [vmem:[%s218] sm:$0xff] %v2130
        %2397 = vst [vmem:[%s218 + $0x8] sm:$0xff] %v2132
        %2398 = vst [vmem:[%s218 + $0x10] sm:$0xff] %v2259
        %2399 = vst [vmem:[%s218 + $0x18] sm:$0xff] %v2261
        %2400 = vst [vmem:[%s218 + $0x20] sm:$0xff] %v2388
        %2401 = vst [vmem:[%s218 + $0x28] sm:$0xff] %v2390
        %2402 = vst [vmem:[%s218 + $0x30] sm:$0xff] %v2134
        %2403 = vst [vmem:[%s218 + $0x38] sm:$0xff] %v2136
        %2404 = vst [vmem:[%s218 + $0x40] sm:$0xff] %v2263
        %2405 = vst [vmem:[%s218 + $0x48] sm:$0xff] %v2265
        %2406 = vst [vmem:[%s218 + $0x50] sm:$0xff] %v2392
        %2407 = vst [vmem:[%s218 + $0x58] sm:$0xff] %v2394
        %s2408 = sand.u32 %s97, 1
        %s2409 = scalar_lea.sflag [#allocation4], %s2408
        %s2410 = sand.u32 %s97, 1
        %s2411 = smul.addr %s2410, 96
        %s2412 = scalar_lea.vmem [#allocation8], %s2411
        // Predicated region
        $region45: #{tpu_custom_call.1} parent=31 // pred_check
          %p2413 = pneg %p107
        $region46: #{tpu_custom_call.1} parent=31 // pred_check_branch
          %2415 = sbr.rel (%p2413) target = $region48
        $region47: #{tpu_custom_call.1} parent=31 // pred_region
          %s2416 = smul.u32 2, %s21
          %s2418 = ssub.s32 1536, 1536
          %2419 = vsyncadd %s2409, %s2418
          %s2420 = smul.addr %s2416, 6
          %s2421 = smul.addr %s2420, 128
          %s2422 = scalar_lea.hbm %s3, %s2421
          %s2423 = sshll.u32 %s2412, 4
          %s2424 = int_to_ptr.vmem [resolvable:$true] %s2423
          %2429 = dma.vmem_to_hbm [thread:$0]  %s2424, 1536, %s2422, %s2409, 768, 768, 48
        $region48: #{tpu_custom_call.1} parent=31 // pred_fallthru
          _
      $region32: #{tpu_custom_call.1} parent=5 // pred_fallthru
        _
      %p2430 = scmp.le.s32.totalorder 2, %s16
      // Predicated region
      $region49: #{tpu_custom_call.1} parent=5 // pred_check
        %p2431 = pneg %p2430
      $region50: #{tpu_custom_call.1} parent=5 // pred_check_branch
        %2433 = sbr.rel (%p2431) target = $region52
      $region51: #{tpu_custom_call.1} parent=5 // pred_region
        %s2434 = ssub.s32 %s16, 2
        // Predicated region
        $region53: #{tpu_custom_call.1} parent=51 // pred_check
          %p2435 = pneg %p113
        $region54: #{tpu_custom_call.1} parent=51 // pred_check_branch
          %2437 = sbr.rel (%p2435) target = $region56
        $region55: #{tpu_custom_call.1} parent=51 // pred_region
          %s2438 = sand.u32 %s98, 1
          %s2439 = scalar_lea.sflag [#allocation4], %s2438
          %s2440 = sand.u32 %s98, 1
          %s2441 = smul.addr %s2440, 96
          %s2442 = scalar_lea.vmem [#allocation8], %s2441
          %2443 = dma.done %s2439, 1536
        $region56: #{tpu_custom_call.1} parent=51 // pred_fallthru
          _
      $region52: #{tpu_custom_call.1} parent=5 // pred_fallthru
        _
    $region6: #{tpu_custom_call.1} parent=1 // loop_footer
      %s20 = sadd.s32 1, %s16
    $region7: #{tpu_custom_call.1} parent=1 // loop_footer_branch
      %15 = sbr.rel target = $region3
    $region8: #{tpu_custom_call.1} parent=1 // loop_exit
      _
    %2444 = vsyncpa [#allocation3], 1
    %s2445 = scalar_lea.sflag [#allocation3], 1
    %2446 = vsyncpa %s2445, 1
    %2447 = vsyncpa [#allocation6], 1
    %2448 = vsyncpa [#allocation4], 1
    %s2449 = scalar_lea.sflag [#allocation4], 1
    %2450 = vsyncpa %s2449, 1

</llo_original>
